<compile_context>
chip_gen: v7x
topology: tpu7x:2x2x1
jax: 0.10.0
libtpu: 0.0.40
codegen_flags: <defaults>
</compile_context>

<pallas_src>
import math

import numpy as np
import jax
import jax.numpy as jnp
from jax import lax
from jax.experimental import pallas as pl
from jax.experimental.pallas import tpu as pltpu  # noqa: F401  (TPU backend target)

# Model hyper-parameters (small TowerViT(dim, heads, hidden, depth))
DIM = 32
HEADS = 4
HIDDEN = 64
DEPTH = 2
DH = DIM // HEADS
LN_EPS = 1e-5

# Lane offsets inside the fused per-layer row-weight slab (D, 3D + D + HIDDEN).
W_QKV_OFF = 0
W_O_OFF = 3 * DIM              # 96  (wo ends exactly on the 128-lane boundary)
W_1_OFF = 4 * DIM              # 128 (tile aligned)
W_ROW_WIDTH = 4 * DIM + HIDDEN # 192
VEC_WIDTH = max(3 * DIM, HIDDEN)  # 96

_HP = lax.Precision.HIGHEST    # pure-JAX reference only


def _layer_norm(x, w, b):
    mu = jnp.mean(x, axis=-1, keepdims=True)
    var = jnp.mean(jnp.square(x - mu), axis=-1, keepdims=True)
    return (x - mu) * lax.rsqrt(var + LN_EPS) * w + b


def _erf(x):
    # Abramowitz & Stegun 7.1.26 rational approximation, |err| < 1.5e-7.
    a1, a2, a3, a4, a5 = 0.254829592, -0.284496736, 1.421413741, -1.453152027, 1.061405429
    p = 0.3275911
    s = jnp.where(x < 0.0, -1.0, 1.0)
    ax = jnp.abs(x)
    t = 1.0 / (1.0 + p * ax)
    y = 1.0 - ((((a5 * t + a4) * t + a3) * t + a2) * t + a1) * t * jnp.exp(-ax * ax)
    return s * y


# --------------------------------------------------------------------------
# Pallas kernel: full TowerViT forward (all layers, all sequences) in one shot.
# --------------------------------------------------------------------------
def tower_kernel(x_ref, mask_ref, vec_ref, wrow_ref, w2_ref, o_ref):
    bs = x_ref.shape[0]          # B*S rows (batch folded into matmul rows)
    bhs = HEADS * bs             # B*HEADS*S replicated key|value rows
    bf16 = jnp.bfloat16

    x = x_ref[...]                                                   # (BS, D) f32

    # Constant masks, hoisted once out of the layer loop.
    kv_mask = mask_ref[0:bhs, 0:2 * DIM]                             # (BHS, 2D) bf16
    xb_mask = mask_ref[bhs:bhs + bs, 0:bhs].astype(jnp.float32)      # (BS, BHS)
    blk_ones = mask_ref[bhs + bs:2 * bhs + bs, 0:bhs]                # (BHS, BHS) bf16

    for d in range(DEPTH):       # static unroll (fine at DEPTH == 2)
        vec = vec_ref[d]                                             # (8, 96) f32
        ln1w, ln1b = vec[0:1, 0:DIM], vec[1:2, 0:DIM]
        b_o = vec[2:3, 0:DIM]
        ln2w, ln2b = vec[3:4, 0:DIM], vec[4:5, 0:DIM]
        b2 = vec[5:6, 0:DIM]
        b_qkv = vec[6:7, 0:3 * DIM]
        b1 = vec[7:8, 0:HIDDEN]

        wr = wrow_ref[d]                                             # (D, 192) bf16
        w_qkv = wr[:, W_QKV_OFF:W_O_OFF]                             # (D, 3D)
        w_o = wr[:, W_O_OFF:W_1_OFF]                                 # (D, D)
        w_1 = wr[:, W_1_OFF:W_ROW_WIDTH]                             # (D, HIDDEN)
        w_2 = w2_ref[d]                                              # (HIDDEN, D)

        # ---- LayerNorm 1 + fused QKV (q columns pre-scaled by 1/sqrt(dh)) ----
        h = _layer_norm(x, ln1w, ln1b)
        qkv = jnp.dot(h.astype(bf16), w_qkv,
                      preferred_element_type=jnp.float32) + b_qkv    # (BS, 3D) f32
        q = qkv[:, 0:DIM].astype(bf16)                               # (BS, D)
        kv = qkv[:, DIM:3 * DIM]                                     # (BS, 2D) f32

        # ---- all-batch / all-head attention via block-masked matmuls ----
        # Replicated row c = head*BS + (b*S + t) holds key|value t of sequence b,
        # restricted to that head's lanes (single replicate+mask for k and v).
        kv_rep = (jnp.concatenate([kv] * HEADS, axis=0).astype(bf16)
                  * kv_mask)                                         # (BHS, 2D)
        k_rep = kv_rep[:, 0:DIM]
        v_rep = kv_rep[:, DIM:2 * DIM]

        # logits[r, c] = <q_head(c)[r], k_head(c)[c % BS]> (scale already baked in)
        logits = lax.dot_general(q, k_rep, (((1,), (1,)), ((), ())),
                                 preferred_element_type=jnp.float32)  # (BS, BHS)
        # Row max spans all heads/batches: a constant shift per row cancels in the
        # softmax; with 0.02-scale weights cross-group underflow is impossible.
        m = jnp.max(logits, axis=-1, keepdims=True)
        p = jnp.exp(logits - m) * xb_mask         # zero cross-batch probabilities
        # Per-(query, head) sums, broadcast back to every column of that head.
        denom = jnp.dot(p.astype(bf16), blk_ones,
                        preferred_element_type=jnp.float32)
        attn = (p * pl.reciprocal(denom, approx=True)).astype(bf16)
        attn_out = jnp.dot(attn, v_rep,
                           preferred_element_type=jnp.float32)        # (BS, D)

        # ---- output projection + residual ----
        x = x + jnp.dot(attn_out.astype(bf16), w_o,
                        preferred_element_type=jnp.float32) + b_o

        # ---- LayerNorm 2 + MLP (exact-erf GELU) + residual ----
        h2 = _layer_norm(x, ln2w, ln2b)
        f = jnp.dot(h2.astype(bf16), w_1,
                    preferred_element_type=jnp.float32) + b1
        f = 0.5 * f * (1.0 + _erf(f * (1.0 / math.sqrt(2.0))))
        x = x + jnp.dot(f.astype(bf16), w_2,
                        preferred_element_type=jnp.float32) + b2

    o_ref[...] = x


# --------------------------------------------------------------------------
# Host-side constants: one fused attention-mask slab (numpy -> free under jit).
# --------------------------------------------------------------------------
def _build_mask_slab(B, S):
    BS, BHS = B * S, B * HEADS * S
    width = max(2 * DIM, BHS)
    c = np.arange(BHS)
    head_c = c // BS                     # replicated-row c = head*BS + b*S + t
    batch_c = (c % BS) // S

    kv_mask = np.zeros((BHS, width), np.float32)
    j = np.arange(2 * DIM)
    kv_mask[:, :2 * DIM] = head_c[:, None] == (j[None, :] % DIM) // DH

    xb_mask = np.zeros((BS, width), np.float32)
    r = np.arange(BS)
    xb_mask[:, :BHS] = (r[:, None] // S) == batch_c[None, :]

    blk_ones = np.zeros((BHS, width), np.float32)
    blk_ones[:, :BHS] = head_c[:, None] == head_c[None, :]

    slab = np.concatenate([kv_mask, xb_mask, blk_ones], axis=0)       # (2*BHS+BS, W)
    return jnp.asarray(slab, dtype=jnp.bfloat16)


# --------------------------------------------------------------------------
# Wrapper: ONE pallas_call, no grid (all operands are tiny and live in VMEM).
# --------------------------------------------------------------------------
def tower_vit_forward(x, kernel_params):
    vecs, wrow, w2s = kernel_params
    B, S, D = x.shape
    masks = _build_mask_slab(B, S)

    out = pl.pallas_call(
        tower_kernel,
        out_shape=jax.ShapeDtypeStruct((B * S, D), x.dtype),
        # No grid / default whole-array BlockSpecs: single invocation, every
        # operand mapped whole into VMEM (total footprint ~100 KB).
    )(x.reshape(B * S, D), masks, vecs, wrow, w2s)
    return out.reshape(B, S, D)


# --------------------------------------------------------------------------
# Deterministic PyTorch-layout parameters + packing into kernel slabs.
# --------------------------------------------------------------------------
def init_torch_params(key):
    layers = []
    for _ in range(DEPTH):
        key, *ks = jax.random.split(key, 9)
        nrm = lambda k, shape: 0.02 * jax.random.normal(k, shape, jnp.float32)
        layers.append(dict(
            w_qkv=nrm(ks[0], (3 * DIM, DIM)), b_qkv=nrm(ks[1], (3 * DIM,)),
            w_o=nrm(ks[2], (DIM, DIM)),       b_o=nrm(ks[3], (DIM,)),
            w1=nrm(ks[4], (HIDDEN, DIM)),     b1=nrm(ks[5], (HIDDEN,)),
            w2=nrm(ks[6], (DIM, HIDDEN)),     b2=nrm(ks[7], (DIM,)),
            ln1w=jnp.ones((DIM,), jnp.float32), ln1b=jnp.zeros((DIM,), jnp.float32),
            ln2w=jnp.ones((DIM,), jnp.float32), ln2b=jnp.zeros((DIM,), jnp.float32),
        ))
    return layers


def pack_params(layers):
    # Column order reproducing torch's reshape(B,S,H,3*dh).chunk(3,-1) split.
    base = (np.arange(HEADS)[:, None] * (3 * DH) + np.arange(DH)[None, :]).reshape(-1)
    idx_q, idx_k, idx_v = base, base + DH, base + 2 * DH
    scale = 1.0 / math.sqrt(DH)            # baked into the q projection + bias

    vecs, wrows, w2s = [], [], []
    for L in layers:
        w_qkv = np.asarray(L["w_qkv"], np.float32)
        b_qkv = np.asarray(L["b_qkv"], np.float32)
        wq = w_qkv[idx_q].T * scale
        wk = w_qkv[idx_k].T
        wv = w_qkv[idx_v].T
        wqkv = np.concatenate([wq, wk, wv], axis=1)                  # (D, 3D)
        bqkv = np.concatenate([b_qkv[idx_q] * scale, b_qkv[idx_k], b_qkv[idx_v]])

        wrows.append(np.concatenate(
            [wqkv, np.asarray(L["w_o"]).T, np.asarray(L["w1"]).T], axis=1))  # (D, 192)
        w2s.append(np.asarray(L["w2"]).T)                                    # (HIDDEN, D)

        def row(v):
            v = np.asarray(v, np.float32).reshape(-1)
            return np.pad(v, (0, VEC_WIDTH - v.shape[0]))
        vecs.append(np.stack([row(L["ln1w"]), row(L["ln1b"]), row(L["b_o"]),
                              row(L["ln2w"]), row(L["ln2b"]), row(L["b2"]),
                              row(bqkv), row(L["b1"])], axis=0))             # (8, 96)

    return (jnp.asarray(np.stack(vecs), jnp.float32),
            jnp.asarray(np.stack(wrows), jnp.bfloat16),
            jnp.asarray(np.stack(w2s), jnp.bfloat16))


# --------------------------------------------------------------------------
# Pure-JAX float32 reference mirroring the PyTorch forward exactly.
# --------------------------------------------------------------------------
def tower_vit_reference(x, layers):
    B, S, D = x.shape

    def ln(y, w, b):
        mu = jnp.mean(y, axis=-1, keepdims=True)
        var = jnp.mean(jnp.square(y - mu), axis=-1, keepdims=True)
        return (y - mu) * lax.rsqrt(var + LN_EPS) * w + b

    for L in layers:
        h = ln(x, L["ln1w"], L["ln1b"])
        qkv = jnp.einsum("bsd,ed->bse", h, L["w_qkv"], precision=_HP) + L["b_qkv"]
        qkv = qkv.reshape(B, S, HEADS, 3 * DH).transpose(0, 2, 1, 3)   # (B,H,S,3dh)
        q, k, v = qkv[..., :DH], qkv[..., DH:2 * DH], qkv[..., 2 * DH:]
        logits = jnp.einsum("bhqe,bhke->bhqk", q, k, precision=_HP) / math.sqrt(DH)
        attn = jax.nn.softmax(logits, axis=-1)
        out = jnp.einsum("bhqk,bhke->bhqe", attn, v, precision=_HP)
        out = out.transpose(0, 2, 1, 3).reshape(B, S, D)
        x = x + jnp.einsum("bsd,ed->bse", out, L["w_o"], precision=_HP) + L["b_o"]
        h2 = ln(x, L["ln2w"], L["ln2b"])
        f = jnp.einsum("bsd,hd->bsh", h2, L["w1"], precision=_HP) + L["b1"]
        f = 0.5 * f * (1.0 + lax.erf(f * (1.0 / math.sqrt(2.0))))
        x = x + jnp.einsum("bsh,dh->bsd", f, L["w2"], precision=_HP) + L["b2"]
    return x


if __name__ == "__main__":
    key = jax.random.PRNGKey(0)
    kx, kp = jax.random.split(key)
    B, S = 2, 8
    x = jax.random.normal(kx, (B, S, DIM), jnp.float32)

    torch_layers = init_torch_params(kp)
    kernel_params = pack_params(torch_layers)

    fwd = jax.jit(tower_vit_forward)
    y = jax.block_until_ready(fwd(x, kernel_params))
    y_ref = tower_vit_reference(x, torch_layers)

    assert y.shape == (B, S, DIM)
    max_err = float(jnp.max(jnp.abs(y - y_ref)))
    # tolerance covers single-pass bf16 MXU operands + approx reciprocal/erf
    assert jnp.allclose(y, y_ref, atol=1e-2, rtol=1e-2), max_err
    print("KERNEL_OK")
</pallas_src>

<mosaic_0001>
module attributes {stable_mosaic.version = 11 : i64} {
  func.func @tower_kernel(%arg0: memref<16x32xf32, #tpu.memory_space<vmem>>, %arg1: memref<144x64xbf16, #tpu.memory_space<vmem>>, %arg2: memref<2x8x96xf32, #tpu.memory_space<vmem>>, %arg3: memref<2x32x192xbf16, #tpu.memory_space<vmem>>, %arg4: memref<2x64x32xbf16, #tpu.memory_space<vmem>>, %arg5: memref<16x32xf32, #tpu.memory_space<vmem>>) attributes {dimension_semantics = [], scalar_prefetch = 0 : i64, scratch_operands = 0 : i64, tpu.core_type = #tpu.core_type<tc>} {
    %c0 = arith.constant 0 : index
    %c0_0 = arith.constant 0 : index
    %0 = vector.load %arg0[%c0, %c0_0] : memref<16x32xf32, #tpu.memory_space<vmem>>, vector<16x32xf32>
    %c0_1 = arith.constant 0 : index
    %c0_2 = arith.constant 0 : index
    %1 = vector.load %arg1[%c0_1, %c0_2] : memref<144x64xbf16, #tpu.memory_space<vmem>>, vector<64x64xbf16>
    %c64 = arith.constant 64 : index
    %c0_3 = arith.constant 0 : index
    %2 = vector.load %arg1[%c64, %c0_3] : memref<144x64xbf16, #tpu.memory_space<vmem>>, vector<16x64xbf16>
    %3 = arith.extf %2 : vector<16x64xbf16> to vector<16x64xf32>
    %c80 = arith.constant 80 : index
    %c0_4 = arith.constant 0 : index
    %4 = vector.load %arg1[%c80, %c0_4] : memref<144x64xbf16, #tpu.memory_space<vmem>>, vector<64x64xbf16>
    %c0_5 = arith.constant 0 : index
    %c0_6 = arith.constant 0 : index
    %c0_7 = arith.constant 0 : index
    %5 = vector.load %arg2[%c0_5, %c0_6, %c0_7] : memref<2x8x96xf32, #tpu.memory_space<vmem>>, vector<1x8x96xf32>
    %6 = vector.shape_cast %5 : vector<1x8x96xf32> to vector<8x96xf32>
    %7 = vector.extract_strided_slice %6 {offsets = [0, 0], sizes = [1, 32], strides = [1, 1]} : vector<8x96xf32> to vector<1x32xf32>
    %8 = vector.extract_strided_slice %6 {offsets = [1, 0], sizes = [1, 32], strides = [1, 1]} : vector<8x96xf32> to vector<1x32xf32>
    %9 = vector.extract_strided_slice %6 {offsets = [2, 0], sizes = [1, 32], strides = [1, 1]} : vector<8x96xf32> to vector<1x32xf32>
    %10 = vector.extract_strided_slice %6 {offsets = [3, 0], sizes = [1, 32], strides = [1, 1]} : vector<8x96xf32> to vector<1x32xf32>
    %11 = vector.extract_strided_slice %6 {offsets = [4, 0], sizes = [1, 32], strides = [1, 1]} : vector<8x96xf32> to vector<1x32xf32>
    %12 = vector.extract_strided_slice %6 {offsets = [5, 0], sizes = [1, 32], strides = [1, 1]} : vector<8x96xf32> to vector<1x32xf32>
    %13 = vector.extract_strided_slice %6 {offsets = [6, 0], sizes = [1, 96], strides = [1, 1]} : vector<8x96xf32> to vector<1x96xf32>
    %14 = vector.extract_strided_slice %6 {offsets = [7, 0], sizes = [1, 64], strides = [1, 1]} : vector<8x96xf32> to vector<1x64xf32>
    %c0_8 = arith.constant 0 : index
    %c0_9 = arith.constant 0 : index
    %c0_10 = arith.constant 0 : index
    %15 = vector.load %arg3[%c0_8, %c0_9, %c0_10] : memref<2x32x192xbf16, #tpu.memory_space<vmem>>, vector<1x32x192xbf16>
    %16 = vector.shape_cast %15 : vector<1x32x192xbf16> to vector<32x192xbf16>
    %17 = vector.extract_strided_slice %16 {offsets = [0, 0], sizes = [32, 96], strides = [1, 1]} : vector<32x192xbf16> to vector<32x96xbf16>
    %18 = vector.extract_strided_slice %16 {offsets = [0, 96], sizes = [32, 32], strides = [1, 1]} : vector<32x192xbf16> to vector<32x32xbf16>
    %19 = vector.extract_strided_slice %16 {offsets = [0, 128], sizes = [32, 64], strides = [1, 1]} : vector<32x192xbf16> to vector<32x64xbf16>
    %c0_11 = arith.constant 0 : index
    %c0_12 = arith.constant 0 : index
    %c0_13 = arith.constant 0 : index
    %20 = vector.load %arg4[%c0_11, %c0_12, %c0_13] : memref<2x64x32xbf16, #tpu.memory_space<vmem>>, vector<1x64x32xbf16>
    %21 = vector.shape_cast %20 : vector<1x64x32xbf16> to vector<64x32xbf16>
    %cst = arith.constant dense<0.000000e+00> : vector<16xf32>
    %22 = vector.multi_reduction <add>, %0, %cst [1] : vector<16x32xf32> to vector<16xf32>
    %23 = vector.shape_cast %22 : vector<16xf32> to vector<16x1xf32>
    %cst_14 = arith.constant 3.200000e+01 : f32
    %24 = vector.broadcast %cst_14 : f32 to vector<16x1xf32>
    %25 = arith.divf %23, %24 : vector<16x1xf32>
    %26 = vector.broadcast %25 : vector<16x1xf32> to vector<16x32xf32>
    %27 = arith.subf %0, %26 : vector<16x32xf32>
    %28 = arith.mulf %27, %27 : vector<16x32xf32>
    %cst_15 = arith.constant dense<0.000000e+00> : vector<16xf32>
    %29 = vector.multi_reduction <add>, %28, %cst_15 [1] : vector<16x32xf32> to vector<16xf32>
    %30 = vector.shape_cast %29 : vector<16xf32> to vector<16x1xf32>
    %cst_16 = arith.constant 3.200000e+01 : f32
    %31 = vector.broadcast %cst_16 : f32 to vector<16x1xf32>
    %32 = arith.divf %30, %31 : vector<16x1xf32>
    %33 = vector.broadcast %25 : vector<16x1xf32> to vector<16x32xf32>
    %34 = arith.subf %0, %33 : vector<16x32xf32>
    %cst_17 = arith.constant 9.99999974E-6 : f32
    %35 = vector.broadcast %cst_17 : f32 to vector<16x1xf32>
    %36 = arith.addf %32, %35 : vector<16x1xf32>
    %37 = math.rsqrt %36 : vector<16x1xf32>
    %38 = vector.broadcast %37 : vector<16x1xf32> to vector<16x32xf32>
    %39 = arith.mulf %34, %38 : vector<16x32xf32>
    %40 = vector.broadcast %7 : vector<1x32xf32> to vector<16x32xf32>
    %41 = arith.mulf %39, %40 : vector<16x32xf32>
    %42 = vector.broadcast %8 : vector<1x32xf32> to vector<16x32xf32>
    %43 = arith.addf %41, %42 : vector<16x32xf32>
    %44 = arith.truncf %43 : vector<16x32xf32> to vector<16x32xbf16>
    %cst_18 = arith.constant dense<0.000000e+00> : vector<16x96xf32>
    %45 = tpu.matmul %44, %17, %cst_18 {dimension_numbers = #tpu.dot_dimension_numbers<[1], [0], [0], [1], [0, 0, 1, 1], [], []>} : vector<16x32xbf16>, vector<32x96xbf16>, vector<16x96xf32> -> vector<16x96xf32>
    %46 = vector.broadcast %13 : vector<1x96xf32> to vector<16x96xf32>
    %47 = arith.addf %45, %46 : vector<16x96xf32>
    %48 = vector.extract_strided_slice %47 {offsets = [0, 0], sizes = [16, 32], strides = [1, 1]} : vector<16x96xf32> to vector<16x32xf32>
    %49 = arith.truncf %48 : vector<16x32xf32> to vector<16x32xbf16>
    %50 = vector.extract_strided_slice %47 {offsets = [0, 32], sizes = [16, 64], strides = [1, 1]} : vector<16x96xf32> to vector<16x64xf32>
    %51 = tpu.concatenate %50, %50, %50, %50 in 0 : vector<16x64xf32>, vector<16x64xf32>, vector<16x64xf32>, vector<16x64xf32> -> vector<64x64xf32>
    %52 = arith.truncf %51 : vector<64x64xf32> to vector<64x64xbf16>
    %53 = arith.mulf %52, %1 : vector<64x64xbf16>
    %54 = vector.extract_strided_slice %53 {offsets = [0, 0], sizes = [64, 32], strides = [1, 1]} : vector<64x64xbf16> to vector<64x32xbf16>
    %55 = vector.extract_strided_slice %53 {offsets = [0, 32], sizes = [64, 32], strides = [1, 1]} : vector<64x64xbf16> to vector<64x32xbf16>
    %cst_19 = arith.constant dense<0.000000e+00> : vector<16x64xf32>
    %56 = tpu.matmul %49, %54, %cst_19 {dimension_numbers = #tpu.dot_dimension_numbers<[1], [1], [0], [0], [0, 0, 1, 0], [], []>} : vector<16x32xbf16>, vector<64x32xbf16>, vector<16x64xf32> -> vector<16x64xf32>
    %cst_20 = arith.constant dense<0xFF800000> : vector<16xf32>
    %57 = vector.multi_reduction <maximumf>, %56, %cst_20 [1] : vector<16x64xf32> to vector<16xf32>
    %58 = vector.shape_cast %57 : vector<16xf32> to vector<16x1xf32>
    %59 = vector.broadcast %58 : vector<16x1xf32> to vector<16x64xf32>
    %60 = arith.subf %56, %59 : vector<16x64xf32>
    %61 = math.exp %60 : vector<16x64xf32>
    %62 = arith.mulf %61, %3 : vector<16x64xf32>
    %63 = arith.truncf %62 : vector<16x64xf32> to vector<16x64xbf16>
    %cst_21 = arith.constant dense<0.000000e+00> : vector<16x64xf32>
    %64 = tpu.matmul %63, %4, %cst_21 {dimension_numbers = #tpu.dot_dimension_numbers<[1], [0], [0], [1], [0, 0, 1, 1], [], []>} : vector<16x64xbf16>, vector<64x64xbf16>, vector<16x64xf32> -> vector<16x64xf32>
    %65 = tpu.reciprocal %64 {approx = true} : vector<16x64xf32> -> vector<16x64xf32>
    %66 = arith.mulf %62, %65 : vector<16x64xf32>
    %67 = arith.truncf %66 : vector<16x64xf32> to vector<16x64xbf16>
    %cst_22 = arith.constant dense<0.000000e+00> : vector<16x32xf32>
    %68 = tpu.matmul %67, %55, %cst_22 {dimension_numbers = #tpu.dot_dimension_numbers<[1], [0], [0], [1], [0, 0, 1, 1], [], []>} : vector<16x64xbf16>, vector<64x32xbf16>, vector<16x32xf32> -> vector<16x32xf32>
    %69 = arith.truncf %68 : vector<16x32xf32> to vector<16x32xbf16>
    %cst_23 = arith.constant dense<0.000000e+00> : vector<16x32xf32>
    %70 = tpu.matmul %69, %18, %cst_23 {dimension_numbers = #tpu.dot_dimension_numbers<[1], [0], [0], [1], [0, 0, 1, 1], [], []>} : vector<16x32xbf16>, vector<32x32xbf16>, vector<16x32xf32> -> vector<16x32xf32>
    %71 = arith.addf %0, %70 : vector<16x32xf32>
    %72 = vector.broadcast %9 : vector<1x32xf32> to vector<16x32xf32>
    %73 = arith.addf %71, %72 : vector<16x32xf32>
    %cst_24 = arith.constant dense<0.000000e+00> : vector<16xf32>
    %74 = vector.multi_reduction <add>, %73, %cst_24 [1] : vector<16x32xf32> to vector<16xf32>
    %75 = vector.shape_cast %74 : vector<16xf32> to vector<16x1xf32>
    %cst_25 = arith.constant 3.200000e+01 : f32
    %76 = vector.broadcast %cst_25 : f32 to vector<16x1xf32>
    %77 = arith.divf %75, %76 : vector<16x1xf32>
    %78 = vector.broadcast %77 : vector<16x1xf32> to vector<16x32xf32>
    %79 = arith.subf %73, %78 : vector<16x32xf32>
    %80 = arith.mulf %79, %79 : vector<16x32xf32>
    %cst_26 = arith.constant dense<0.000000e+00> : vector<16xf32>
    %81 = vector.multi_reduction <add>, %80, %cst_26 [1] : vector<16x32xf32> to vector<16xf32>
    %82 = vector.shape_cast %81 : vector<16xf32> to vector<16x1xf32>
    %cst_27 = arith.constant 3.200000e+01 : f32
    %83 = vector.broadcast %cst_27 : f32 to vector<16x1xf32>
    %84 = arith.divf %82, %83 : vector<16x1xf32>
    %85 = vector.broadcast %77 : vector<16x1xf32> to vector<16x32xf32>
    %86 = arith.subf %73, %85 : vector<16x32xf32>
    %cst_28 = arith.constant 9.99999974E-6 : f32
    %87 = vector.broadcast %cst_28 : f32 to vector<16x1xf32>
    %88 = arith.addf %84, %87 : vector<16x1xf32>
    %89 = math.rsqrt %88 : vector<16x1xf32>
    %90 = vector.broadcast %89 : vector<16x1xf32> to vector<16x32xf32>
    %91 = arith.mulf %86, %90 : vector<16x32xf32>
    %92 = vector.broadcast %10 : vector<1x32xf32> to vector<16x32xf32>
    %93 = arith.mulf %91, %92 : vector<16x32xf32>
    %94 = vector.broadcast %11 : vector<1x32xf32> to vector<16x32xf32>
    %95 = arith.addf %93, %94 : vector<16x32xf32>
    %96 = arith.truncf %95 : vector<16x32xf32> to vector<16x32xbf16>
    %cst_29 = arith.constant dense<0.000000e+00> : vector<16x64xf32>
    %97 = tpu.matmul %96, %19, %cst_29 {dimension_numbers = #tpu.dot_dimension_numbers<[1], [0], [0], [1], [0, 0, 1, 1], [], []>} : vector<16x32xbf16>, vector<32x64xbf16>, vector<16x64xf32> -> vector<16x64xf32>
    %98 = vector.broadcast %14 : vector<1x64xf32> to vector<16x64xf32>
    %99 = arith.addf %97, %98 : vector<16x64xf32>
    %cst_30 = arith.constant 5.000000e-01 : f32
    %100 = vector.broadcast %cst_30 : f32 to vector<16x64xf32>
    %101 = arith.mulf %100, %99 : vector<16x64xf32>
    %cst_31 = arith.constant 0.707106769 : f32
    %102 = vector.broadcast %cst_31 : f32 to vector<16x64xf32>
    %103 = arith.mulf %99, %102 : vector<16x64xf32>
    %cst_32 = arith.constant 0.000000e+00 : f32
    %104 = vector.broadcast %cst_32 : f32 to vector<16x64xf32>
    %105 = arith.cmpf olt, %103, %104 : vector<16x64xf32>
    %cst_33 = arith.constant -1.000000e+00 : f32
    %cst_34 = arith.constant 1.000000e+00 : f32
    %106 = vector.broadcast %cst_33 : f32 to vector<16x64xf32>
    %107 = vector.broadcast %cst_34 : f32 to vector<16x64xf32>
    %108 = arith.select %105, %106, %107 : vector<16x64xi1>, vector<16x64xf32>
    %109 = math.absf %103 : vector<16x64xf32>
    %cst_35 = arith.constant 0.327591091 : f32
    %110 = vector.broadcast %cst_35 : f32 to vector<16x64xf32>
    %111 = arith.mulf %110, %109 : vector<16x64xf32>
    %cst_36 = arith.constant 1.000000e+00 : f32
    %112 = vector.broadcast %cst_36 : f32 to vector<16x64xf32>
    %113 = arith.addf %112, %111 : vector<16x64xf32>
    %cst_37 = arith.constant 1.000000e+00 : f32
    %114 = vector.broadcast %cst_37 : f32 to vector<16x64xf32>
    %115 = arith.divf %114, %113 : vector<16x64xf32>
    %cst_38 = arith.constant 1.06140542 : f32
    %116 = vector.broadcast %cst_38 : f32 to vector<16x64xf32>
    %117 = arith.mulf %116, %115 : vector<16x64xf32>
    %cst_39 = arith.constant -1.45315206 : f32
    %118 = vector.broadcast %cst_39 : f32 to vector<16x64xf32>
    %119 = arith.addf %117, %118 : vector<16x64xf32>
    %120 = arith.mulf %119, %115 : vector<16x64xf32>
    %cst_40 = arith.constant 1.42141378 : f32
    %121 = vector.broadcast %cst_40 : f32 to vector<16x64xf32>
    %122 = arith.addf %120, %121 : vector<16x64xf32>
    %123 = arith.mulf %122, %115 : vector<16x64xf32>
    %cst_41 = arith.constant -0.284496725 : f32
    %124 = vector.broadcast %cst_41 : f32 to vector<16x64xf32>
    %125 = arith.addf %123, %124 : vector<16x64xf32>
    %126 = arith.mulf %125, %115 : vector<16x64xf32>
    %cst_42 = arith.constant 0.254829586 : f32
    %127 = vector.broadcast %cst_42 : f32 to vector<16x64xf32>
    %128 = arith.addf %126, %127 : vector<16x64xf32>
    %129 = arith.mulf %128, %115 : vector<16x64xf32>
    %cst_43 = arith.constant 0.000000e+00 : f32
    %130 = vector.broadcast %cst_43 : f32 to vector<16x64xf32>
    %131 = arith.subf %130, %109 : vector<16x64xf32>
    %132 = arith.mulf %131, %109 : vector<16x64xf32>
    %133 = math.exp %132 : vector<16x64xf32>
    %134 = arith.mulf %129, %133 : vector<16x64xf32>
    %cst_44 = arith.constant 1.000000e+00 : f32
    %135 = vector.broadcast %cst_44 : f32 to vector<16x64xf32>
    %136 = arith.subf %135, %134 : vector<16x64xf32>
    %137 = arith.mulf %108, %136 : vector<16x64xf32>
    %cst_45 = arith.constant 1.000000e+00 : f32
    %138 = vector.broadcast %cst_45 : f32 to vector<16x64xf32>
    %139 = arith.addf %138, %137 : vector<16x64xf32>
    %140 = arith.mulf %101, %139 : vector<16x64xf32>
    %141 = arith.truncf %140 : vector<16x64xf32> to vector<16x64xbf16>
    %cst_46 = arith.constant dense<0.000000e+00> : vector<16x32xf32>
    %142 = tpu.matmul %141, %21, %cst_46 {dimension_numbers = #tpu.dot_dimension_numbers<[1], [0], [0], [1], [0, 0, 1, 1], [], []>} : vector<16x64xbf16>, vector<64x32xbf16>, vector<16x32xf32> -> vector<16x32xf32>
    %143 = arith.addf %73, %142 : vector<16x32xf32>
    %144 = vector.broadcast %12 : vector<1x32xf32> to vector<16x32xf32>
    %145 = arith.addf %143, %144 : vector<16x32xf32>
    %c1 = arith.constant 1 : index
    %c0_47 = arith.constant 0 : index
    %c0_48 = arith.constant 0 : index
    %146 = vector.load %arg2[%c1, %c0_47, %c0_48] : memref<2x8x96xf32, #tpu.memory_space<vmem>>, vector<1x8x96xf32>
    %147 = vector.shape_cast %146 : vector<1x8x96xf32> to vector<8x96xf32>
    %148 = vector.extract_strided_slice %147 {offsets = [0, 0], sizes = [1, 32], strides = [1, 1]} : vector<8x96xf32> to vector<1x32xf32>
    %149 = vector.extract_strided_slice %147 {offsets = [1, 0], sizes = [1, 32], strides = [1, 1]} : vector<8x96xf32> to vector<1x32xf32>
    %150 = vector.extract_strided_slice %147 {offsets = [2, 0], sizes = [1, 32], strides = [1, 1]} : vector<8x96xf32> to vector<1x32xf32>
    %151 = vector.extract_strided_slice %147 {offsets = [3, 0], sizes = [1, 32], strides = [1, 1]} : vector<8x96xf32> to vector<1x32xf32>
    %152 = vector.extract_strided_slice %147 {offsets = [4, 0], sizes = [1, 32], strides = [1, 1]} : vector<8x96xf32> to vector<1x32xf32>
    %153 = vector.extract_strided_slice %147 {offsets = [5, 0], sizes = [1, 32], strides = [1, 1]} : vector<8x96xf32> to vector<1x32xf32>
    %154 = vector.extract_strided_slice %147 {offsets = [6, 0], sizes = [1, 96], strides = [1, 1]} : vector<8x96xf32> to vector<1x96xf32>
    %155 = vector.extract_strided_slice %147 {offsets = [7, 0], sizes = [1, 64], strides = [1, 1]} : vector<8x96xf32> to vector<1x64xf32>
    %c1_49 = arith.constant 1 : index
    %c0_50 = arith.constant 0 : index
    %c0_51 = arith.constant 0 : index
    %156 = vector.load %arg3[%c1_49, %c0_50, %c0_51] : memref<2x32x192xbf16, #tpu.memory_space<vmem>>, vector<1x32x192xbf16>
    %157 = vector.shape_cast %156 : vector<1x32x192xbf16> to vector<32x192xbf16>
    %158 = vector.extract_strided_slice %157 {offsets = [0, 0], sizes = [32, 96], strides = [1, 1]} : vector<32x192xbf16> to vector<32x96xbf16>
    %159 = vector.extract_strided_slice %157 {offsets = [0, 96], sizes = [32, 32], strides = [1, 1]} : vector<32x192xbf16> to vector<32x32xbf16>
    %160 = vector.extract_strided_slice %157 {offsets = [0, 128], sizes = [32, 64], strides = [1, 1]} : vector<32x192xbf16> to vector<32x64xbf16>
    %c1_52 = arith.constant 1 : index
    %c0_53 = arith.constant 0 : index
    %c0_54 = arith.constant 0 : index
    %161 = vector.load %arg4[%c1_52, %c0_53, %c0_54] : memref<2x64x32xbf16, #tpu.memory_space<vmem>>, vector<1x64x32xbf16>
    %162 = vector.shape_cast %161 : vector<1x64x32xbf16> to vector<64x32xbf16>
    %cst_55 = arith.constant dense<0.000000e+00> : vector<16xf32>
    %163 = vector.multi_reduction <add>, %145, %cst_55 [1] : vector<16x32xf32> to vector<16xf32>
    %164 = vector.shape_cast %163 : vector<16xf32> to vector<16x1xf32>
    %cst_56 = arith.constant 3.200000e+01 : f32
    %165 = vector.broadcast %cst_56 : f32 to vector<16x1xf32>
    %166 = arith.divf %164, %165 : vector<16x1xf32>
    %167 = vector.broadcast %166 : vector<16x1xf32> to vector<16x32xf32>
    %168 = arith.subf %145, %167 : vector<16x32xf32>
    %169 = arith.mulf %168, %168 : vector<16x32xf32>
    %cst_57 = arith.constant dense<0.000000e+00> : vector<16xf32>
    %170 = vector.multi_reduction <add>, %169, %cst_57 [1] : vector<16x32xf32> to vector<16xf32>
    %171 = vector.shape_cast %170 : vector<16xf32> to vector<16x1xf32>
    %cst_58 = arith.constant 3.200000e+01 : f32
    %172 = vector.broadcast %cst_58 : f32 to vector<16x1xf32>
    %173 = arith.divf %171, %172 : vector<16x1xf32>
    %174 = vector.broadcast %166 : vector<16x1xf32> to vector<16x32xf32>
    %175 = arith.subf %145, %174 : vector<16x32xf32>
    %cst_59 = arith.constant 9.99999974E-6 : f32
    %176 = vector.broadcast %cst_59 : f32 to vector<16x1xf32>
    %177 = arith.addf %173, %176 : vector<16x1xf32>
    %178 = math.rsqrt %177 : vector<16x1xf32>
    %179 = vector.broadcast %178 : vector<16x1xf32> to vector<16x32xf32>
    %180 = arith.mulf %175, %179 : vector<16x32xf32>
    %181 = vector.broadcast %148 : vector<1x32xf32> to vector<16x32xf32>
    %182 = arith.mulf %180, %181 : vector<16x32xf32>
    %183 = vector.broadcast %149 : vector<1x32xf32> to vector<16x32xf32>
    %184 = arith.addf %182, %183 : vector<16x32xf32>
    %185 = arith.truncf %184 : vector<16x32xf32> to vector<16x32xbf16>
    %cst_60 = arith.constant dense<0.000000e+00> : vector<16x96xf32>
    %186 = tpu.matmul %185, %158, %cst_60 {dimension_numbers = #tpu.dot_dimension_numbers<[1], [0], [0], [1], [0, 0, 1, 1], [], []>} : vector<16x32xbf16>, vector<32x96xbf16>, vector<16x96xf32> -> vector<16x96xf32>
    %187 = vector.broadcast %154 : vector<1x96xf32> to vector<16x96xf32>
    %188 = arith.addf %186, %187 : vector<16x96xf32>
    %189 = vector.extract_strided_slice %188 {offsets = [0, 0], sizes = [16, 32], strides = [1, 1]} : vector<16x96xf32> to vector<16x32xf32>
    %190 = arith.truncf %189 : vector<16x32xf32> to vector<16x32xbf16>
    %191 = vector.extract_strided_slice %188 {offsets = [0, 32], sizes = [16, 64], strides = [1, 1]} : vector<16x96xf32> to vector<16x64xf32>
    %192 = tpu.concatenate %191, %191, %191, %191 in 0 : vector<16x64xf32>, vector<16x64xf32>, vector<16x64xf32>, vector<16x64xf32> -> vector<64x64xf32>
    %193 = arith.truncf %192 : vector<64x64xf32> to vector<64x64xbf16>
    %194 = arith.mulf %193, %1 : vector<64x64xbf16>
    %195 = vector.extract_strided_slice %194 {offsets = [0, 0], sizes = [64, 32], strides = [1, 1]} : vector<64x64xbf16> to vector<64x32xbf16>
    %196 = vector.extract_strided_slice %194 {offsets = [0, 32], sizes = [64, 32], strides = [1, 1]} : vector<64x64xbf16> to vector<64x32xbf16>
    %cst_61 = arith.constant dense<0.000000e+00> : vector<16x64xf32>
    %197 = tpu.matmul %190, %195, %cst_61 {dimension_numbers = #tpu.dot_dimension_numbers<[1], [1], [0], [0], [0, 0, 1, 0], [], []>} : vector<16x32xbf16>, vector<64x32xbf16>, vector<16x64xf32> -> vector<16x64xf32>
    %cst_62 = arith.constant dense<0xFF800000> : vector<16xf32>
    %198 = vector.multi_reduction <maximumf>, %197, %cst_62 [1] : vector<16x64xf32> to vector<16xf32>
    %199 = vector.shape_cast %198 : vector<16xf32> to vector<16x1xf32>
    %200 = vector.broadcast %199 : vector<16x1xf32> to vector<16x64xf32>
    %201 = arith.subf %197, %200 : vector<16x64xf32>
    %202 = math.exp %201 : vector<16x64xf32>
    %203 = arith.mulf %202, %3 : vector<16x64xf32>
    %204 = arith.truncf %203 : vector<16x64xf32> to vector<16x64xbf16>
    %cst_63 = arith.constant dense<0.000000e+00> : vector<16x64xf32>
    %205 = tpu.matmul %204, %4, %cst_63 {dimension_numbers = #tpu.dot_dimension_numbers<[1], [0], [0], [1], [0, 0, 1, 1], [], []>} : vector<16x64xbf16>, vector<64x64xbf16>, vector<16x64xf32> -> vector<16x64xf32>
    %206 = tpu.reciprocal %205 {approx = true} : vector<16x64xf32> -> vector<16x64xf32>
    %207 = arith.mulf %203, %206 : vector<16x64xf32>
    %208 = arith.truncf %207 : vector<16x64xf32> to vector<16x64xbf16>
    %cst_64 = arith.constant dense<0.000000e+00> : vector<16x32xf32>
    %209 = tpu.matmul %208, %196, %cst_64 {dimension_numbers = #tpu.dot_dimension_numbers<[1], [0], [0], [1], [0, 0, 1, 1], [], []>} : vector<16x64xbf16>, vector<64x32xbf16>, vector<16x32xf32> -> vector<16x32xf32>
    %210 = arith.truncf %209 : vector<16x32xf32> to vector<16x32xbf16>
    %cst_65 = arith.constant dense<0.000000e+00> : vector<16x32xf32>
    %211 = tpu.matmul %210, %159, %cst_65 {dimension_numbers = #tpu.dot_dimension_numbers<[1], [0], [0], [1], [0, 0, 1, 1], [], []>} : vector<16x32xbf16>, vector<32x32xbf16>, vector<16x32xf32> -> vector<16x32xf32>
    %212 = arith.addf %145, %211 : vector<16x32xf32>
    %213 = vector.broadcast %150 : vector<1x32xf32> to vector<16x32xf32>
    %214 = arith.addf %212, %213 : vector<16x32xf32>
    %cst_66 = arith.constant dense<0.000000e+00> : vector<16xf32>
    %215 = vector.multi_reduction <add>, %214, %cst_66 [1] : vector<16x32xf32> to vector<16xf32>
    %216 = vector.shape_cast %215 : vector<16xf32> to vector<16x1xf32>
    %cst_67 = arith.constant 3.200000e+01 : f32
    %217 = vector.broadcast %cst_67 : f32 to vector<16x1xf32>
    %218 = arith.divf %216, %217 : vector<16x1xf32>
    %219 = vector.broadcast %218 : vector<16x1xf32> to vector<16x32xf32>
    %220 = arith.subf %214, %219 : vector<16x32xf32>
    %221 = arith.mulf %220, %220 : vector<16x32xf32>
    %cst_68 = arith.constant dense<0.000000e+00> : vector<16xf32>
    %222 = vector.multi_reduction <add>, %221, %cst_68 [1] : vector<16x32xf32> to vector<16xf32>
    %223 = vector.shape_cast %222 : vector<16xf32> to vector<16x1xf32>
    %cst_69 = arith.constant 3.200000e+01 : f32
    %224 = vector.broadcast %cst_69 : f32 to vector<16x1xf32>
    %225 = arith.divf %223, %224 : vector<16x1xf32>
    %226 = vector.broadcast %218 : vector<16x1xf32> to vector<16x32xf32>
    %227 = arith.subf %214, %226 : vector<16x32xf32>
    %cst_70 = arith.constant 9.99999974E-6 : f32
    %228 = vector.broadcast %cst_70 : f32 to vector<16x1xf32>
    %229 = arith.addf %225, %228 : vector<16x1xf32>
    %230 = math.rsqrt %229 : vector<16x1xf32>
    %231 = vector.broadcast %230 : vector<16x1xf32> to vector<16x32xf32>
    %232 = arith.mulf %227, %231 : vector<16x32xf32>
    %233 = vector.broadcast %151 : vector<1x32xf32> to vector<16x32xf32>
    %234 = arith.mulf %232, %233 : vector<16x32xf32>
    %235 = vector.broadcast %152 : vector<1x32xf32> to vector<16x32xf32>
    %236 = arith.addf %234, %235 : vector<16x32xf32>
    %237 = arith.truncf %236 : vector<16x32xf32> to vector<16x32xbf16>
    %cst_71 = arith.constant dense<0.000000e+00> : vector<16x64xf32>
    %238 = tpu.matmul %237, %160, %cst_71 {dimension_numbers = #tpu.dot_dimension_numbers<[1], [0], [0], [1], [0, 0, 1, 1], [], []>} : vector<16x32xbf16>, vector<32x64xbf16>, vector<16x64xf32> -> vector<16x64xf32>
    %239 = vector.broadcast %155 : vector<1x64xf32> to vector<16x64xf32>
    %240 = arith.addf %238, %239 : vector<16x64xf32>
    %cst_72 = arith.constant 5.000000e-01 : f32
    %241 = vector.broadcast %cst_72 : f32 to vector<16x64xf32>
    %242 = arith.mulf %241, %240 : vector<16x64xf32>
    %cst_73 = arith.constant 0.707106769 : f32
    %243 = vector.broadcast %cst_73 : f32 to vector<16x64xf32>
    %244 = arith.mulf %240, %243 : vector<16x64xf32>
    %cst_74 = arith.constant 0.000000e+00 : f32
    %245 = vector.broadcast %cst_74 : f32 to vector<16x64xf32>
    %246 = arith.cmpf olt, %244, %245 : vector<16x64xf32>
    %cst_75 = arith.constant -1.000000e+00 : f32
    %cst_76 = arith.constant 1.000000e+00 : f32
    %247 = vector.broadcast %cst_75 : f32 to vector<16x64xf32>
    %248 = vector.broadcast %cst_76 : f32 to vector<16x64xf32>
    %249 = arith.select %246, %247, %248 : vector<16x64xi1>, vector<16x64xf32>
    %250 = math.absf %244 : vector<16x64xf32>
    %cst_77 = arith.constant 0.327591091 : f32
    %251 = vector.broadcast %cst_77 : f32 to vector<16x64xf32>
    %252 = arith.mulf %251, %250 : vector<16x64xf32>
    %cst_78 = arith.constant 1.000000e+00 : f32
    %253 = vector.broadcast %cst_78 : f32 to vector<16x64xf32>
    %254 = arith.addf %253, %252 : vector<16x64xf32>
    %cst_79 = arith.constant 1.000000e+00 : f32
    %255 = vector.broadcast %cst_79 : f32 to vector<16x64xf32>
    %256 = arith.divf %255, %254 : vector<16x64xf32>
    %cst_80 = arith.constant 1.06140542 : f32
    %257 = vector.broadcast %cst_80 : f32 to vector<16x64xf32>
    %258 = arith.mulf %257, %256 : vector<16x64xf32>
    %cst_81 = arith.constant -1.45315206 : f32
    %259 = vector.broadcast %cst_81 : f32 to vector<16x64xf32>
    %260 = arith.addf %258, %259 : vector<16x64xf32>
    %261 = arith.mulf %260, %256 : vector<16x64xf32>
    %cst_82 = arith.constant 1.42141378 : f32
    %262 = vector.broadcast %cst_82 : f32 to vector<16x64xf32>
    %263 = arith.addf %261, %262 : vector<16x64xf32>
    %264 = arith.mulf %263, %256 : vector<16x64xf32>
    %cst_83 = arith.constant -0.284496725 : f32
    %265 = vector.broadcast %cst_83 : f32 to vector<16x64xf32>
    %266 = arith.addf %264, %265 : vector<16x64xf32>
    %267 = arith.mulf %266, %256 : vector<16x64xf32>
    %cst_84 = arith.constant 0.254829586 : f32
    %268 = vector.broadcast %cst_84 : f32 to vector<16x64xf32>
    %269 = arith.addf %267, %268 : vector<16x64xf32>
    %270 = arith.mulf %269, %256 : vector<16x64xf32>
    %cst_85 = arith.constant 0.000000e+00 : f32
    %271 = vector.broadcast %cst_85 : f32 to vector<16x64xf32>
    %272 = arith.subf %271, %250 : vector<16x64xf32>
    %273 = arith.mulf %272, %250 : vector<16x64xf32>
    %274 = math.exp %273 : vector<16x64xf32>
    %275 = arith.mulf %270, %274 : vector<16x64xf32>
    %cst_86 = arith.constant 1.000000e+00 : f32
    %276 = vector.broadcast %cst_86 : f32 to vector<16x64xf32>
    %277 = arith.subf %276, %275 : vector<16x64xf32>
    %278 = arith.mulf %249, %277 : vector<16x64xf32>
    %cst_87 = arith.constant 1.000000e+00 : f32
    %279 = vector.broadcast %cst_87 : f32 to vector<16x64xf32>
    %280 = arith.addf %279, %278 : vector<16x64xf32>
    %281 = arith.mulf %242, %280 : vector<16x64xf32>
    %282 = arith.truncf %281 : vector<16x64xf32> to vector<16x64xbf16>
    %cst_88 = arith.constant dense<0.000000e+00> : vector<16x32xf32>
    %283 = tpu.matmul %282, %162, %cst_88 {dimension_numbers = #tpu.dot_dimension_numbers<[1], [0], [0], [1], [0, 0, 1, 1], [], []>} : vector<16x64xbf16>, vector<64x32xbf16>, vector<16x32xf32> -> vector<16x32xf32>
    %284 = arith.addf %214, %283 : vector<16x32xf32>
    %285 = vector.broadcast %153 : vector<1x32xf32> to vector<16x32xf32>
    %286 = arith.addf %284, %285 : vector<16x32xf32>
    %c0_89 = arith.constant 0 : index
    %c0_90 = arith.constant 0 : index
    %287 = vector.load %arg5[%c0_89, %c0_90] : memref<16x32xf32, #tpu.memory_space<vmem>>, vector<16x32xf32>
    tpu.vector_store %arg5[%c0_89, %c0_90], %286 {strides = array<i32>} : memref<16x32xf32, #tpu.memory_space<vmem>>, vector<16x32xf32>,
    return
  }
}

</mosaic_0001>

<llo_original>
// kernel: tower_vit_forward.1
$region0: #{tower_vit_forward.1}
  #allocation0 [shape = 'u32[]', space=smem, size = 0x4, offset = 0x4, fixed_abs, tag = 'smem constant byte address 0x4 - core index']
  #allocation1 [shape = 'u32[144,128]{1,0:T(1,128)}', space=vmem, size = 0x12000, scoped, tag = 'internal scratch']
  %s0 = inlined_call_operand.vmem [shape: f32[16,32], index: 0, kind: input, shape index: {}]
  %s1 = inlined_call_operand.vmem [shape: bf16[144,64], index: 1, kind: input, shape index: {}]
  %s2 = inlined_call_operand.vmem [shape: f32[2,8,96], index: 2, kind: input, shape index: {}]
  %s3 = inlined_call_operand.hbm [shape: bf16[2,32,192], index: 3, kind: input, shape index: {}]
  %s4 = inlined_call_operand.vmem [shape: bf16[2,64,32], index: 4, kind: input, shape index: {}]
  %s5 = inlined_call_operand.hbm [shape: f32[16,32], index: 5, kind: output, shape index: {}]
  %s6 = sld [smem:[#allocation0]]
  $region34: #{tower_vit_forward.1} parent=0
    _
  %s8 = ssub.s32 1, %s6
  %s9 = scalar_select 0, %s8, %s6
  $region1: #{tower_vit_forward.1} parent=0
    #allocation2 [shape = 'u8[32768]{0}', space=vmem, size = 0x8000, scoped, tag = 'input window, operand 3, single buffered']
    #allocation3 [shape = 's32[1]{0}', space=sflag, size = 0x4, scoped, tag = 'scoped memory for tower_vit_forward.1']
    #allocation4 [shape = 's32[1]{0}', space=sflag, size = 0x4, scoped, tag = 'scoped memory for tower_vit_forward.1']
    #allocation5 [shape = 'u8[8192]{0}', space=vmem, size = 0x2000, scoped, tag = 'output window, operand 0, single buffered']
    %10 = vsyncpa [#allocation3], 0
    %11 = vsyncpa [#allocation4], 0
    // Predicated region
    $region2: #{tower_vit_forward.1} parent=1 // pred_check
      _
    $region3: #{tower_vit_forward.1} parent=1 // pred_check_branch
      %13 = sbr.rel (0) target = $region5
    $region4: #{tower_vit_forward.1} parent=1 // pred_region
      _
    $region5: #{tower_vit_forward.1} parent=1 // pred_fallthru
      _
    // Predicated region
    $region6: #{tower_vit_forward.1} parent=1 // pred_check
      _
    $region7: #{tower_vit_forward.1} parent=1 // pred_check_branch
      %15 = sbr.rel (0) target = $region9
    $region8: #{tower_vit_forward.1} parent=1 // pred_region
      _
    $region9: #{tower_vit_forward.1} parent=1 // pred_fallthru
      _
    // Predicated region
    $region10: #{tower_vit_forward.1} parent=1 // pred_check
      _
    $region11: #{tower_vit_forward.1} parent=1 // pred_check_branch
      %17 = sbr.rel (0) target = $region13
    $region12: #{tower_vit_forward.1} parent=1 // pred_region
      _
    $region13: #{tower_vit_forward.1} parent=1 // pred_fallthru
      _
    // Predicated region
    $region14: #{tower_vit_forward.1} parent=1 // pred_check
      _
    $region15: #{tower_vit_forward.1} parent=1 // pred_check_branch
      %19 = sbr.rel (0) target = $region17
    $region16: #{tower_vit_forward.1} parent=1 // pred_region
      %s21 = ssub.s32 1024, 1024
      %22 = vsyncadd [#allocation3], %s21
      %s23 = sshll.u32 [#allocation2], 4
      %s24 = int_to_ptr.vmem [resolvable:$true] %s23
      %29 = dma.hbm_to_vmem [thread:$0]  %s3, 1024, %s24, [#allocation3], 128, 128, 8
    $region17: #{tower_vit_forward.1} parent=1 // pred_fallthru
      _
    // Predicated region
    $region18: #{tower_vit_forward.1} parent=1 // pred_check
      _
    $region19: #{tower_vit_forward.1} parent=1 // pred_check_branch
      %31 = sbr.rel (0) target = $region21
    $region20: #{tower_vit_forward.1} parent=1 // pred_region
      _
    $region21: #{tower_vit_forward.1} parent=1 // pred_fallthru
      _
    // Predicated region
    $region22: #{tower_vit_forward.1} parent=1 // pred_check
      _
    $region23: #{tower_vit_forward.1} parent=1 // pred_check_branch
      %33 = sbr.rel (0) target = $region25
    $region24: #{tower_vit_forward.1} parent=1 // pred_region
      %34 = dma.done [#allocation3], 1024
    $region25: #{tower_vit_forward.1} parent=1 // pred_fallthru
      _
    %v36 = vld [vmem:[%s0] sm:$0xff]
    %v37 = vld [vmem:[%s0 + $0x8] sm:$0xff]
    %v38 = vld [vmem:[%s1] sm:$0xf]
    %v39 = vld [vmem:[%s1 + $0x4] sm:$0xf]
    %v40 = vld [vmem:[%s1 + $0x8] sm:$0xf]
    %v41 = vld [vmem:[%s1 + $0xc] sm:$0xf]
    %v42 = vld [vmem:[%s1 + $0x10] sm:$0xf]
    %v43 = vld [vmem:[%s1 + $0x14] sm:$0xf]
    %v44 = vld [vmem:[%s1 + $0x18] sm:$0xf]
    %v45 = vld [vmem:[%s1 + $0x1c] sm:$0xf]
    %v46 = vld [vmem:[%s1 + $0x20] sm:$0xf]
    %v47 = vld [vmem:[%s1 + $0x24] sm:$0xf]
    %v48 = vunpack.c.l.bf16 %v46
    %v49 = vunpack.c.l.bf16 %v47
    %v50 = vld [vmem:[%s1 + $0x28] sm:$0xf]
    %v51 = vld [vmem:[%s1 + $0x2c] sm:$0xf]
    %v52 = vld [vmem:[%s1 + $0x30] sm:$0xf]
    %v53 = vld [vmem:[%s1 + $0x34] sm:$0xf]
    %v54 = vld [vmem:[%s1 + $0x38] sm:$0xf]
    %v55 = vld [vmem:[%s1 + $0x3c] sm:$0xf]
    %v56 = vld [vmem:[%s1 + $0x40] sm:$0xf]
    %v57 = vld [vmem:[%s1 + $0x44] sm:$0xf]
    %v58 = vld [vmem:[%s2] sm:$0xff]
    %v59 = vld [vmem:[#allocation2] sm:$0xff]
    %v60 = vld [vmem:[#allocation2 + $0x8] sm:$0xff]
    %v61 = vld [vmem:[#allocation2 + $0x10] sm:$0xff]
    %v62 = vld [vmem:[#allocation2 + $0x18] sm:$0xff]
    %v63 = vld [vmem:[%s4] sm:$0xf]
    %v64 = vld [vmem:[%s4 + $0x4] sm:$0xf]
    %v65 = vld [vmem:[%s4 + $0x8] sm:$0xf]
    %v66 = vld [vmem:[%s4 + $0xc] sm:$0xf]
    %v67 = vld [vmem:[%s4 + $0x10] sm:$0xf]
    %v68 = vld [vmem:[%s4 + $0x14] sm:$0xf]
    %v69 = vld [vmem:[%s4 + $0x18] sm:$0xf]
    %v70 = vld [vmem:[%s4 + $0x1c] sm:$0xf]
    %vm71 = vcmask 261120
    %v72 = vsel %vm71, %v36, 0.0
    %73 = vadd.xlane.f32.xlu0 %v72
    %v74 = vpop.xlane.xlu0 %73
    %v75 = vsel %vm71, %v37, 0.0
    %76 = vadd.xlane.f32.xlu0 %v75
    %v77 = vpop.xlane.xlu0 %76
    %v78 = vrcp.pop 32.0
    %v79 = vmul.f32 %v74, %v78
    %v80 = vmul.f32 %v77, %v78
    %v81 = vsub.f32 %v36, %v79
    %v82 = vsub.f32 %v37, %v80
    %v83 = vmul.f32 %v81, %v81
    %v84 = vmul.f32 %v82, %v82
    %v85 = vsel %vm71, %v83, 0.0
    %86 = vadd.xlane.f32.xlu0 %v85
    %v87 = vpop.xlane.xlu0 %86
    %v88 = vsel %vm71, %v84, 0.0
    %89 = vadd.xlane.f32.xlu0 %v88
    %v90 = vpop.xlane.xlu0 %89
    %v91 = vmul.f32 %v87, %v78
    %v92 = vmul.f32 %v90, %v78
    %v93 = vadd.f32 %v91, 1e-05
    %v94 = vadd.f32 %v92, 1e-05
    %v95 = vrsqrt.pop %v93
    %v96 = vrsqrt.pop %v94
    %v97 = vmul.f32 %v81, %v95
    %v98 = vmul.f32 %v82, %v96
    %v99 = vlaneseq
    %v100 = vshrl.u32 %v99, 7
    %v101 = vsub.s32 0, %v100
    %v102 = vrot.slane %v58, %v101
    %v103 = vmul.f32 %v97, %v102
    %v104 = vmul.f32 %v98, %v102
    %v105 = vlaneseq
    %v106 = vshrl.u32 %v105, 7
    %v107 = vsub.s32 1, %v106
    %v108 = vrot.slane %v58, %v107
    %v109 = vadd.f32 %v103, %v108
    %v110 = vadd.f32 %v104, %v108
    %v111 = vpack.c.bf16 %v110, %v109
    %v112 = vlaneseq
    %v113 = vshrl.u32 %v112, 7
    %v114 = vsub.s32 6, %v113
    %v115 = vrot.slane %v58, %v114
    %v120 = vunpack.c.l.b16 %v59
    %v121 = vunpack.c.l.b16 %v60
    %v122 = vunpack.c.l.b16 %v61
    %v123 = vunpack.c.l.b16 %v62
    %v124 = vpack.c.b16 %v121, %v120
    %v125 = vpack.c.b16 %v123, %v122
    %v129 = vsel %vm71, %v111, 0
    %131 = vmatprep.subr.bf16.mxu0 0
    %132 = vmatpush1.bf16.msra.mxu0 %v124
    %133 = vmatprep.subr.bf16.mxu0 0
    %134 = vmatpush1.bf16.msra.mxu0 %v125
    %135 = vmatprep.subr.bf16.mxu0 0
    %136 = vmatpush1.bf16.msra.mxu0 0
    %137 = vmatprep.subr.bf16.mxu0 0
    %138 = vmatpush1.bf16.msra.mxu0 0
    %139 = vmatprep.subr.bf16.mxu0 0
    %140 = vmatpush1.bf16.msra.mxu0 0
    %141 = vmatprep.subr.bf16.mxu0 0
    %142 = vmatpush1.bf16.msra.mxu0 0
    %143 = vmatprep.subr.bf16.mxu0 0
    %144 = vmatpush1.bf16.msra.mxu0 0
    %145 = vmatprep.subr.bf16.mxu0 0
    %146 = vmatpush1.bf16.msra.mxu0 0
    %147 = vmatprep.subr.bf16.mxu0 0
    %148 = vmatpush1.bf16.msra.mxu0 0
    %149 = vmatprep.subr.bf16.mxu0 0
    %150 = vmatpush1.bf16.msra.mxu0 0
    %151 = vmatprep.subr.bf16.mxu0 0
    %152 = vmatpush1.bf16.msra.mxu0 0
    %153 = vmatprep.subr.bf16.mxu0 0
    %154 = vmatpush1.bf16.msra.mxu0 0
    %155 = vmatprep.subr.bf16.mxu0 0
    %156 = vmatpush1.bf16.msra.mxu0 0
    %157 = vmatprep.subr.bf16.mxu0 0
    %158 = vmatpush1.bf16.msra.mxu0 0
    %159 = vmatprep.subr.bf16.mxu0 0
    %160 = vmatpush1.bf16.msra.mxu0 0
    %161 = vmatprep.subr.bf16.mxu0 0
    %162 = vmatpush1.bf16.msra.mxu0 0
    %163 = vmatprep.mubr.bf16.mxu0 0
    %164 = vmatmul.mubr.bf16.gmra.mrb[0].mxu0 %v129
    %v165 = vpop.f32.mrb[0].mxu0
    %v166 = vadd.f32 %v115, %v165
    %v167 = vpop.f32.mrb[0].mxu0
    %v168 = vpop.f32.mrb[0].mxu0
    %v169 = vadd.f32 %v115, %v168
    %v170 = vpop.f32.mrb[0].mxu0
    %171 = vdwg.mxu0
    %v172 = vpack.c.bf16 %v169, %v166
    %v181 = vunpack.c.l.b16 %v38
    %v182 = vunpack.c.l.b16 %v39
    %v183 = vunpack.c.l.b16 %v40
    %v184 = vunpack.c.l.b16 %v41
    %v185 = vunpack.c.l.b16 %v42
    %v186 = vunpack.c.l.b16 %v43
    %v187 = vunpack.c.l.b16 %v44
    %v188 = vunpack.c.l.b16 %v45
    %v189 = vpack.c.b16 %v182, %v181
    %v190 = vpack.c.b16 %v184, %v183
    %v191 = vpack.c.b16 %v186, %v185
    %v192 = vpack.c.b16 %v188, %v187
    %193 = vrot.lane.b32.xlu0 %v189, 32
    %v194 = vpop.permute.xlu0 %193
    %195 = vrot.lane.b32.xlu0 %v190, 32
    %v196 = vpop.permute.xlu0 %195
    %197 = vrot.lane.b32.xlu0 %v191, 32
    %v198 = vpop.permute.xlu0 %197
    %199 = vrot.lane.b32.xlu0 %v192, 32
    %v200 = vpop.permute.xlu0 %199
    %v205 = vmul.bf16 %v172, %v194
    %v206 = vmul.bf16 %v172, %v196
    %v207 = vmul.bf16 %v172, %v198
    %v208 = vmul.bf16 %v172, %v200
    %213 = vrot.lane.b32.xlu0 %v205, 96
    %v214 = vpop.permute.xlu0 %213
    %215 = vrot.lane.b32.xlu0 %v206, 96
    %v216 = vpop.permute.xlu0 %215
    %217 = vrot.lane.b32.xlu0 %v207, 96
    %v218 = vpop.permute.xlu0 %217
    %219 = vrot.lane.b32.xlu0 %v208, 96
    %v220 = vpop.permute.xlu0 %219
    %v222 = vsel %vm71, %v172, 0
    %v225 = vsel %vm71, %v214, 0
    %v228 = vsel %vm71, %v216, 0
    %v231 = vsel %vm71, %v218, 0
    %v234 = vsel %vm71, %v220, 0
    %236 = vmatprep.subr.bf16.mxu0 0
    %237 = vmatpush1.bf16.xpose.msra.mxu0 %v225
    %238 = vmatprep.subr.bf16.mxu0 0
    %239 = vmatpush1.bf16.xpose.msra.mxu0 %v228
    %240 = vmatprep.subr.bf16.mxu0 0
    %241 = vmatpush1.bf16.xpose.msra.mxu0 %v231
    %242 = vmatprep.subr.bf16.mxu0 0
    %243 = vmatpush1.bf16.xpose.msra.mxu0 %v234
    %244 = vmatprep.subr.bf16.mxu0 0
    %245 = vmatpush1.bf16.xpose.msra.mxu0 0
    %246 = vmatprep.subr.bf16.mxu0 0
    %247 = vmatpush1.bf16.xpose.msra.mxu0 0
    %248 = vmatprep.subr.bf16.mxu0 0
    %249 = vmatpush1.bf16.xpose.msra.mxu0 0
    %250 = vmatprep.subr.bf16.mxu0 0
    %251 = vmatpush1.bf16.xpose.msra.mxu0 0
    %252 = vmatprep.subr.bf16.mxu0 0
    %253 = vmatpush1.bf16.xpose.msra.mxu0 0
    %254 = vmatprep.subr.bf16.mxu0 0
    %255 = vmatpush1.bf16.xpose.msra.mxu0 0
    %256 = vmatprep.subr.bf16.mxu0 0
    %257 = vmatpush1.bf16.xpose.msra.mxu0 0
    %258 = vmatprep.subr.bf16.mxu0 0
    %259 = vmatpush1.bf16.xpose.msra.mxu0 0
    %260 = vmatprep.subr.bf16.mxu0 0
    %261 = vmatpush1.bf16.xpose.msra.mxu0 0
    %262 = vmatprep.subr.bf16.mxu0 0
    %263 = vmatpush1.bf16.xpose.msra.mxu0 0
    %264 = vmatprep.subr.bf16.mxu0 0
    %265 = vmatpush1.bf16.xpose.msra.mxu0 0
    %266 = vmatprep.subr.bf16.mxu0 0
    %267 = vmatpush1.bf16.xpose.msra.mxu0 0
    %268 = vmatprep.mubr.bf16.mxu0 0
    %269 = vmatmul.mubr.bf16.gmra.mrb[0].mxu0 %v222
    %v270 = vpop.f32.mrb[0].mxu0
    %v271 = vadd.f32 0.0, %v270
    %v272 = vpop.f32.mrb[0].mxu0
    %v273 = vpop.f32.mrb[0].mxu0
    %v274 = vadd.f32 0.0, %v273
    %v275 = vpop.f32.mrb[0].mxu0
    %276 = vdwg.mxu0
    %vm277 = vcmask 523264
    %v278 = vsel %vm277, %v271, -inf
    %279 = vmax.xlane.f32.xlu0 %v278
    %v280 = vpop.xlane.xlu0 %279
    %v281 = vsel %vm277, %v274, -inf
    %282 = vmax.xlane.f32.xlu0 %v281
    %v283 = vpop.xlane.xlu0 %282
    %v284 = vsub.f32 %v271, %v280
    %v285 = vsub.f32 %v274, %v283
    %v286 = vmul.f32 %v284, 1.442695
    %v287 = vpow.pop %v286
    %v288 = vmul.f32 %v285, 1.442695
    %v289 = vpow.pop %v288
    %v290 = vmul.f32 %v287, %v48
    %v291 = vmul.f32 %v289, %v49
    %v292 = vpack.c.bf16 %v291, %v290
    %v301 = vunpack.c.l.b16 %v50
    %v302 = vunpack.c.l.b16 %v51
    %v303 = vunpack.c.l.b16 %v52
    %v304 = vunpack.c.l.b16 %v53
    %v305 = vunpack.c.l.b16 %v54
    %v306 = vunpack.c.l.b16 %v55
    %v307 = vunpack.c.l.b16 %v56
    %v308 = vunpack.c.l.b16 %v57
    %v309 = vpack.c.b16 %v302, %v301
    %v310 = vpack.c.b16 %v304, %v303
    %v311 = vpack.c.b16 %v306, %v305
    %v312 = vpack.c.b16 %v308, %v307
    %v318 = vsel %vm277, %v292, 0
    %320 = vmatprep.subr.bf16.mxu0 0
    %321 = vmatpush1.bf16.msra.mxu0 %v309
    %322 = vmatprep.subr.bf16.mxu0 0
    %323 = vmatpush1.bf16.msra.mxu0 %v310
    %324 = vmatprep.subr.bf16.mxu0 0
    %325 = vmatpush1.bf16.msra.mxu0 %v311
    %326 = vmatprep.subr.bf16.mxu0 0
    %327 = vmatpush1.bf16.msra.mxu0 %v312
    %328 = vmatprep.subr.bf16.mxu0 0
    %329 = vmatpush1.bf16.msra.mxu0 0
    %330 = vmatprep.subr.bf16.mxu0 0
    %331 = vmatpush1.bf16.msra.mxu0 0
    %332 = vmatprep.subr.bf16.mxu0 0
    %333 = vmatpush1.bf16.msra.mxu0 0
    %334 = vmatprep.subr.bf16.mxu0 0
    %335 = vmatpush1.bf16.msra.mxu0 0
    %336 = vmatprep.subr.bf16.mxu0 0
    %337 = vmatpush1.bf16.msra.mxu0 0
    %338 = vmatprep.subr.bf16.mxu0 0
    %339 = vmatpush1.bf16.msra.mxu0 0
    %340 = vmatprep.subr.bf16.mxu0 0
    %341 = vmatpush1.bf16.msra.mxu0 0
    %342 = vmatprep.subr.bf16.mxu0 0
    %343 = vmatpush1.bf16.msra.mxu0 0
    %344 = vmatprep.subr.bf16.mxu0 0
    %345 = vmatpush1.bf16.msra.mxu0 0
    %346 = vmatprep.subr.bf16.mxu0 0
    %347 = vmatpush1.bf16.msra.mxu0 0
    %348 = vmatprep.subr.bf16.mxu0 0
    %349 = vmatpush1.bf16.msra.mxu0 0
    %350 = vmatprep.subr.bf16.mxu0 0
    %351 = vmatpush1.bf16.msra.mxu0 0
    %352 = vmatprep.mubr.bf16.mxu0 0
    %353 = vmatmul.mubr.bf16.gmra.mrb[0].mxu0 %v318
    %v354 = vpop.f32.mrb[0].mxu0
    %v355 = vadd.f32 0.0, %v354
    %v356 = vpop.f32.mrb[0].mxu0
    %v357 = vpop.f32.mrb[0].mxu0
    %v358 = vadd.f32 0.0, %v357
    %v359 = vpop.f32.mrb[0].mxu0
    %360 = vdwg.mxu0
    %v361 = vrcp.pop %v355
    %v362 = vrcp.pop %v358
    %v363 = vmul.f32 %v290, %v361
    %v364 = vmul.f32 %v291, %v362
    %v365 = vpack.c.bf16 %v364, %v363
    %366 = vrot.lane.b32.xlu0 %v205, 64
    %v367 = vpop.permute.xlu0 %366
    %368 = vrot.lane.b32.xlu0 %v206, 64
    %v369 = vpop.permute.xlu0 %368
    %370 = vrot.lane.b32.xlu0 %v207, 64
    %v371 = vpop.permute.xlu0 %370
    %372 = vrot.lane.b32.xlu0 %v208, 64
    %v373 = vpop.permute.xlu0 %372
    %v379 = vsel %vm277, %v365, 0
    %381 = vmatprep.subr.bf16.mxu0 0
    %382 = vmatpush1.bf16.msra.mxu0 %v367
    %383 = vmatprep.subr.bf16.mxu0 0
    %384 = vmatpush1.bf16.msra.mxu0 %v369
    %385 = vmatprep.subr.bf16.mxu0 0
    %386 = vmatpush1.bf16.msra.mxu0 %v371
    %387 = vmatprep.subr.bf16.mxu0 0
    %388 = vmatpush1.bf16.msra.mxu0 %v373
    %389 = vmatprep.subr.bf16.mxu0 0
    %390 = vmatpush1.bf16.msra.mxu0 0
    %391 = vmatprep.subr.bf16.mxu0 0
    %392 = vmatpush1.bf16.msra.mxu0 0
    %393 = vmatprep.subr.bf16.mxu0 0
    %394 = vmatpush1.bf16.msra.mxu0 0
    %395 = vmatprep.subr.bf16.mxu0 0
    %396 = vmatpush1.bf16.msra.mxu0 0
    %397 = vmatprep.subr.bf16.mxu0 0
    %398 = vmatpush1.bf16.msra.mxu0 0
    %399 = vmatprep.subr.bf16.mxu0 0
    %400 = vmatpush1.bf16.msra.mxu0 0
    %401 = vmatprep.subr.bf16.mxu0 0
    %402 = vmatpush1.bf16.msra.mxu0 0
    %403 = vmatprep.subr.bf16.mxu0 0
    %404 = vmatpush1.bf16.msra.mxu0 0
    %405 = vmatprep.subr.bf16.mxu0 0
    %406 = vmatpush1.bf16.msra.mxu0 0
    %407 = vmatprep.subr.bf16.mxu0 0
    %408 = vmatpush1.bf16.msra.mxu0 0
    %409 = vmatprep.subr.bf16.mxu0 0
    %410 = vmatpush1.bf16.msra.mxu0 0
    %411 = vmatprep.subr.bf16.mxu0 0
    %412 = vmatpush1.bf16.msra.mxu0 0
    %413 = vmatprep.mubr.bf16.mxu0 0
    %414 = vmatmul.mubr.bf16.gmra.mrb[0].mxu0 %v379
    %v415 = vpop.f32.mrb[0].mxu0
    %v416 = vadd.f32 0.0, %v415
    %v417 = vpop.f32.mrb[0].mxu0
    %v418 = vpop.f32.mrb[0].mxu0
    %v419 = vadd.f32 0.0, %v418
    %v420 = vpop.f32.mrb[0].mxu0
    %421 = vdwg.mxu0
    %v422 = vpack.c.bf16 %v419, %v416
    %423 = vrot.lane.b32.xlu0 %v124, 32
    %v424 = vpop.permute.xlu0 %423
    %425 = vrot.lane.b32.xlu0 %v125, 32
    %v426 = vpop.permute.xlu0 %425
    %v430 = vsel %vm71, %v422, 0
    %432 = vmatprep.subr.bf16.mxu0 0
    %433 = vmatpush1.bf16.msra.mxu0 %v424
    %434 = vmatprep.subr.bf16.mxu0 0
    %435 = vmatpush1.bf16.msra.mxu0 %v426
    %436 = vmatprep.subr.bf16.mxu0 0
    %437 = vmatpush1.bf16.msra.mxu0 0
    %438 = vmatprep.subr.bf16.mxu0 0
    %439 = vmatpush1.bf16.msra.mxu0 0
    %440 = vmatprep.subr.bf16.mxu0 0
    %441 = vmatpush1.bf16.msra.mxu0 0
    %442 = vmatprep.subr.bf16.mxu0 0
    %443 = vmatpush1.bf16.msra.mxu0 0
    %444 = vmatprep.subr.bf16.mxu0 0
    %445 = vmatpush1.bf16.msra.mxu0 0
    %446 = vmatprep.subr.bf16.mxu0 0
    %447 = vmatpush1.bf16.msra.mxu0 0
    %448 = vmatprep.subr.bf16.mxu0 0
    %449 = vmatpush1.bf16.msra.mxu0 0
    %450 = vmatprep.subr.bf16.mxu0 0
    %451 = vmatpush1.bf16.msra.mxu0 0
    %452 = vmatprep.subr.bf16.mxu0 0
    %453 = vmatpush1.bf16.msra.mxu0 0
    %454 = vmatprep.subr.bf16.mxu0 0
    %455 = vmatpush1.bf16.msra.mxu0 0
    %456 = vmatprep.subr.bf16.mxu0 0
    %457 = vmatpush1.bf16.msra.mxu0 0
    %458 = vmatprep.subr.bf16.mxu0 0
    %459 = vmatpush1.bf16.msra.mxu0 0
    %460 = vmatprep.subr.bf16.mxu0 0
    %461 = vmatpush1.bf16.msra.mxu0 0
    %462 = vmatprep.subr.bf16.mxu0 0
    %463 = vmatpush1.bf16.msra.mxu0 0
    %464 = vmatprep.mubr.bf16.mxu0 0
    %465 = vmatmul.mubr.bf16.gmra.mrb[0].mxu0 %v430
    %v466 = vpop.f32.mrb[0].mxu0
    %v467 = vadd.f32 0.0, %v466
    %v468 = vpop.f32.mrb[0].mxu0
    %v469 = vpop.f32.mrb[0].mxu0
    %v470 = vadd.f32 0.0, %v469
    %v471 = vpop.f32.mrb[0].mxu0
    %472 = vdwg.mxu0
    %v473 = vadd.f32 %v36, %v467
    %v474 = vadd.f32 %v37, %v470
    %v475 = vlaneseq
    %v476 = vshrl.u32 %v475, 7
    %v477 = vsub.s32 2, %v476
    %v478 = vrot.slane %v58, %v477
    %v479 = vadd.f32 %v473, %v478
    %v480 = vadd.f32 %v474, %v478
    %v481 = vsel %vm71, %v479, 0.0
    %482 = vadd.xlane.f32.xlu0 %v481
    %v483 = vpop.xlane.xlu0 %482
    %v484 = vsel %vm71, %v480, 0.0
    %485 = vadd.xlane.f32.xlu0 %v484
    %v486 = vpop.xlane.xlu0 %485
    %v487 = vmul.f32 %v483, %v78
    %v488 = vmul.f32 %v486, %v78
    %v489 = vsub.f32 %v479, %v487
    %v490 = vsub.f32 %v480, %v488
    %v491 = vmul.f32 %v489, %v489
    %v492 = vmul.f32 %v490, %v490
    %v493 = vsel %vm71, %v491, 0.0
    %494 = vadd.xlane.f32.xlu0 %v493
    %v495 = vpop.xlane.xlu0 %494
    %v496 = vsel %vm71, %v492, 0.0
    %497 = vadd.xlane.f32.xlu0 %v496
    %v498 = vpop.xlane.xlu0 %497
    %v499 = vmul.f32 %v495, %v78
    %v500 = vmul.f32 %v498, %v78
    %v501 = vadd.f32 %v499, 1e-05
    %v502 = vadd.f32 %v500, 1e-05
    %v503 = vrsqrt.pop %v501
    %v504 = vrsqrt.pop %v502
    %v505 = vmul.f32 %v489, %v503
    %v506 = vmul.f32 %v490, %v504
    %v507 = vlaneseq
    %v508 = vshrl.u32 %v507, 7
    %v509 = vsub.s32 3, %v508
    %v510 = vrot.slane %v58, %v509
    %v511 = vmul.f32 %v505, %v510
    %v512 = vmul.f32 %v506, %v510
    %v513 = vlaneseq
    %v514 = vshrl.u32 %v513, 7
    %v515 = vsub.s32 4, %v514
    %v516 = vrot.slane %v58, %v515
    %v517 = vadd.f32 %v511, %v516
    %v518 = vadd.f32 %v512, %v516
    %v519 = vpack.c.bf16 %v518, %v517
    %v520 = vlaneseq
    %v521 = vshrl.u32 %v520, 7
    %v522 = vsub.s32 7, %v521
    %v523 = vrot.slane %v58, %v522
    %v524 = vunpack.c.h.b16 %v59
    %v525 = vunpack.c.h.b16 %v60
    %v526 = vunpack.c.h.b16 %v61
    %v527 = vunpack.c.h.b16 %v62
    %v528 = vpack.c.b16 %v525, %v524
    %v529 = vpack.c.b16 %v527, %v526
    %v533 = vsel %vm71, %v519, 0
    %535 = vmatprep.subr.bf16.mxu0 0
    %536 = vmatpush1.bf16.msra.mxu0 %v528
    %537 = vmatprep.subr.bf16.mxu0 0
    %538 = vmatpush1.bf16.msra.mxu0 %v529
    %539 = vmatprep.subr.bf16.mxu0 0
    %540 = vmatpush1.bf16.msra.mxu0 0
    %541 = vmatprep.subr.bf16.mxu0 0
    %542 = vmatpush1.bf16.msra.mxu0 0
    %543 = vmatprep.subr.bf16.mxu0 0
    %544 = vmatpush1.bf16.msra.mxu0 0
    %545 = vmatprep.subr.bf16.mxu0 0
    %546 = vmatpush1.bf16.msra.mxu0 0
    %547 = vmatprep.subr.bf16.mxu0 0
    %548 = vmatpush1.bf16.msra.mxu0 0
    %549 = vmatprep.subr.bf16.mxu0 0
    %550 = vmatpush1.bf16.msra.mxu0 0
    %551 = vmatprep.subr.bf16.mxu0 0
    %552 = vmatpush1.bf16.msra.mxu0 0
    %553 = vmatprep.subr.bf16.mxu0 0
    %554 = vmatpush1.bf16.msra.mxu0 0
    %555 = vmatprep.subr.bf16.mxu0 0
    %556 = vmatpush1.bf16.msra.mxu0 0
    %557 = vmatprep.subr.bf16.mxu0 0
    %558 = vmatpush1.bf16.msra.mxu0 0
    %559 = vmatprep.subr.bf16.mxu0 0
    %560 = vmatpush1.bf16.msra.mxu0 0
    %561 = vmatprep.subr.bf16.mxu0 0
    %562 = vmatpush1.bf16.msra.mxu0 0
    %563 = vmatprep.subr.bf16.mxu0 0
    %564 = vmatpush1.bf16.msra.mxu0 0
    %565 = vmatprep.subr.bf16.mxu0 0
    %566 = vmatpush1.bf16.msra.mxu0 0
    %567 = vmatprep.mubr.bf16.mxu0 0
    %568 = vmatmul.mubr.bf16.gmra.mrb[0].mxu0 %v533
    %v569 = vpop.f32.mrb[0].mxu0
    %v570 = vadd.f32 %v523, %v569
    %v571 = vpop.f32.mrb[0].mxu0
    %v572 = vpop.f32.mrb[0].mxu0
    %v573 = vadd.f32 %v523, %v572
    %v574 = vpop.f32.mrb[0].mxu0
    %575 = vdwg.mxu0
    %v576 = vmul.f32 %v570, 0.5
    %v577 = vmul.f32 %v573, 0.5
    %v578 = vmul.f32 %v570, 0.70710677
    %v579 = vmul.f32 %v573, 0.70710677
    %vm580 = vcmp.lt.f32.partialorder %v578, 0.0
    %vm581 = vcmp.lt.f32.partialorder %v579, 0.0
    %v582 = vsel %vm580, -1.0, 1.0
    %v583 = vsel %vm581, -1.0, 1.0
    %v584 = vand.u32 2147483647, %v578
    %v585 = vand.u32 2147483647, %v579
    %v586 = vmul.f32 %v584, 0.3275911
    %v587 = vmul.f32 %v585, 0.3275911
    %v588 = vadd.f32 %v586, 1.0
    %v589 = vadd.f32 %v587, 1.0
    %v590 = vrcp.pop %v588
    %v591 = vmul.f32 1.0, %v590
    %v592 = vrcp.pop %v589
    %v593 = vmul.f32 1.0, %v592
    %v594 = vmul.f32 %v591, 1.0614054
    %v595 = vmul.f32 %v593, 1.0614054
    %v596 = vadd.f32 %v594, -1.4531521
    %v597 = vadd.f32 %v595, -1.4531521
    %v598 = vmul.f32 %v596, %v591
    %v599 = vmul.f32 %v597, %v593
    %v600 = vadd.f32 %v598, 1.4214138
    %v601 = vadd.f32 %v599, 1.4214138
    %v602 = vmul.f32 %v600, %v591
    %v603 = vmul.f32 %v601, %v593
    %v604 = vadd.f32 %v602, -0.28449672
    %v605 = vadd.f32 %v603, -0.28449672
    %v606 = vmul.f32 %v604, %v591
    %v607 = vmul.f32 %v605, %v593
    %v608 = vadd.f32 %v606, 0.2548296
    %v609 = vadd.f32 %v607, 0.2548296
    %v610 = vmul.f32 %v608, %v591
    %v611 = vmul.f32 %v609, %v593
    %v612 = vsub.f32 0.0, %v584
    %v613 = vsub.f32 0.0, %v585
    %v614 = vmul.f32 %v612, %v584
    %v615 = vmul.f32 %v613, %v585
    %v616 = vmul.f32 %v614, 1.442695
    %v617 = vpow.pop %v616
    %v618 = vmul.f32 %v615, 1.442695
    %v619 = vpow.pop %v618
    %v620 = vmul.f32 %v610, %v617
    %v621 = vmul.f32 %v611, %v619
    %v622 = vsub.f32 1.0, %v620
    %v623 = vsub.f32 1.0, %v621
    %v624 = vmul.f32 %v582, %v622
    %v625 = vmul.f32 %v583, %v623
    %v626 = vadd.f32 %v624, 1.0
    %v627 = vadd.f32 %v625, 1.0
    %v628 = vmul.f32 %v576, %v626
    %v629 = vmul.f32 %v577, %v627
    %v630 = vpack.c.bf16 %v629, %v628
    %v639 = vunpack.c.l.b16 %v63
    %v640 = vunpack.c.l.b16 %v64
    %v641 = vunpack.c.l.b16 %v65
    %v642 = vunpack.c.l.b16 %v66
    %v643 = vunpack.c.l.b16 %v67
    %v644 = vunpack.c.l.b16 %v68
    %v645 = vunpack.c.l.b16 %v69
    %v646 = vunpack.c.l.b16 %v70
    %v647 = vpack.c.b16 %v640, %v639
    %v648 = vpack.c.b16 %v642, %v641
    %v649 = vpack.c.b16 %v644, %v643
    %v650 = vpack.c.b16 %v646, %v645
    %v656 = vsel %vm277, %v630, 0
    %658 = vmatprep.subr.bf16.mxu0 0
    %659 = vmatpush1.bf16.msra.mxu0 %v647
    %660 = vmatprep.subr.bf16.mxu0 0
    %661 = vmatpush1.bf16.msra.mxu0 %v648
    %662 = vmatprep.subr.bf16.mxu0 0
    %663 = vmatpush1.bf16.msra.mxu0 %v649
    %664 = vmatprep.subr.bf16.mxu0 0
    %665 = vmatpush1.bf16.msra.mxu0 %v650
    %666 = vmatprep.subr.bf16.mxu0 0
    %667 = vmatpush1.bf16.msra.mxu0 0
    %668 = vmatprep.subr.bf16.mxu0 0
    %669 = vmatpush1.bf16.msra.mxu0 0
    %670 = vmatprep.subr.bf16.mxu0 0
    %671 = vmatpush1.bf16.msra.mxu0 0
    %672 = vmatprep.subr.bf16.mxu0 0
    %673 = vmatpush1.bf16.msra.mxu0 0
    %674 = vmatprep.subr.bf16.mxu0 0
    %675 = vmatpush1.bf16.msra.mxu0 0
    %676 = vmatprep.subr.bf16.mxu0 0
    %677 = vmatpush1.bf16.msra.mxu0 0
    %678 = vmatprep.subr.bf16.mxu0 0
    %679 = vmatpush1.bf16.msra.mxu0 0
    %680 = vmatprep.subr.bf16.mxu0 0
    %681 = vmatpush1.bf16.msra.mxu0 0
    %682 = vmatprep.subr.bf16.mxu0 0
    %683 = vmatpush1.bf16.msra.mxu0 0
    %684 = vmatprep.subr.bf16.mxu0 0
    %685 = vmatpush1.bf16.msra.mxu0 0
    %686 = vmatprep.subr.bf16.mxu0 0
    %687 = vmatpush1.bf16.msra.mxu0 0
    %688 = vmatprep.subr.bf16.mxu0 0
    %689 = vmatpush1.bf16.msra.mxu0 0
    %690 = vmatprep.mubr.bf16.mxu0 0
    %691 = vmatmul.mubr.bf16.gmra.mrb[0].mxu0 %v656
    %v692 = vpop.f32.mrb[0].mxu0
    %v693 = vadd.f32 0.0, %v692
    %v694 = vpop.f32.mrb[0].mxu0
    %v695 = vpop.f32.mrb[0].mxu0
    %v696 = vadd.f32 0.0, %v695
    %v697 = vpop.f32.mrb[0].mxu0
    %698 = vdwg.mxu0
    %v699 = vadd.f32 %v479, %v693
    %v700 = vadd.f32 %v480, %v696
    %v701 = vlaneseq
    %v702 = vshrl.u32 %v701, 7
    %v703 = vsub.s32 5, %v702
    %v704 = vrot.slane %v58, %v703
    %v705 = vadd.f32 %v699, %v704
    %v706 = vadd.f32 %v700, %v704
    %s707 = scalar_lea.vmem %s2, 8
    %v708 = vld [vmem:[%s707] sm:$0xff]
    %s709 = scalar_lea.vmem [#allocation2], 32
    %v710 = vld [vmem:[%s709] sm:$0xff]
    %v711 = vld [vmem:[%s709 + $0x8] sm:$0xff]
    %v712 = vld [vmem:[%s709 + $0x10] sm:$0xff]
    %v713 = vld [vmem:[%s709 + $0x18] sm:$0xff]
    %s714 = scalar_lea.vmem %s4, 32
    %v715 = vld [vmem:[%s714] sm:$0xf]
    %v716 = vld [vmem:[%s714 + $0x4] sm:$0xf]
    %v717 = vld [vmem:[%s714 + $0x8] sm:$0xf]
    %v718 = vld [vmem:[%s714 + $0xc] sm:$0xf]
    %v719 = vld [vmem:[%s714 + $0x10] sm:$0xf]
    %v720 = vld [vmem:[%s714 + $0x14] sm:$0xf]
    %v721 = vld [vmem:[%s714 + $0x18] sm:$0xf]
    %v722 = vld [vmem:[%s714 + $0x1c] sm:$0xf]
    %v723 = vsel %vm71, %v705, 0.0
    %724 = vadd.xlane.f32.xlu0 %v723
    %v725 = vpop.xlane.xlu0 %724
    %v726 = vsel %vm71, %v706, 0.0
    %727 = vadd.xlane.f32.xlu0 %v726
    %v728 = vpop.xlane.xlu0 %727
    %v729 = vmul.f32 %v725, %v78
    %v730 = vmul.f32 %v728, %v78
    %v731 = vsub.f32 %v705, %v729
    %v732 = vsub.f32 %v706, %v730
    %v733 = vmul.f32 %v731, %v731
    %v734 = vmul.f32 %v732, %v732
    %v735 = vsel %vm71, %v733, 0.0
    %736 = vadd.xlane.f32.xlu0 %v735
    %v737 = vpop.xlane.xlu0 %736
    %v738 = vsel %vm71, %v734, 0.0
    %739 = vadd.xlane.f32.xlu0 %v738
    %v740 = vpop.xlane.xlu0 %739
    %v741 = vmul.f32 %v737, %v78
    %v742 = vmul.f32 %v740, %v78
    %v743 = vadd.f32 %v741, 1e-05
    %v744 = vadd.f32 %v742, 1e-05
    %v745 = vrsqrt.pop %v743
    %v746 = vrsqrt.pop %v744
    %v747 = vmul.f32 %v731, %v745
    %v748 = vmul.f32 %v732, %v746
    %v749 = vlaneseq
    %v750 = vshrl.u32 %v749, 7
    %v751 = vsub.s32 0, %v750
    %v752 = vrot.slane %v708, %v751
    %v753 = vmul.f32 %v747, %v752
    %v754 = vmul.f32 %v748, %v752
    %v755 = vlaneseq
    %v756 = vshrl.u32 %v755, 7
    %v757 = vsub.s32 1, %v756
    %v758 = vrot.slane %v708, %v757
    %v759 = vadd.f32 %v753, %v758
    %v760 = vadd.f32 %v754, %v758
    %v761 = vpack.c.bf16 %v760, %v759
    %v762 = vlaneseq
    %v763 = vshrl.u32 %v762, 7
    %v764 = vsub.s32 6, %v763
    %v765 = vrot.slane %v708, %v764
    %v770 = vunpack.c.l.b16 %v710
    %v771 = vunpack.c.l.b16 %v711
    %v772 = vunpack.c.l.b16 %v712
    %v773 = vunpack.c.l.b16 %v713
    %v774 = vpack.c.b16 %v771, %v770
    %v775 = vpack.c.b16 %v773, %v772
    %v779 = vsel %vm71, %v761, 0
    %781 = vmatprep.subr.bf16.mxu0 0
    %782 = vmatpush1.bf16.msra.mxu0 %v774
    %783 = vmatprep.subr.bf16.mxu0 0
    %784 = vmatpush1.bf16.msra.mxu0 %v775
    %785 = vmatprep.subr.bf16.mxu0 0
    %786 = vmatpush1.bf16.msra.mxu0 0
    %787 = vmatprep.subr.bf16.mxu0 0
    %788 = vmatpush1.bf16.msra.mxu0 0
    %789 = vmatprep.subr.bf16.mxu0 0
    %790 = vmatpush1.bf16.msra.mxu0 0
    %791 = vmatprep.subr.bf16.mxu0 0
    %792 = vmatpush1.bf16.msra.mxu0 0
    %793 = vmatprep.subr.bf16.mxu0 0
    %794 = vmatpush1.bf16.msra.mxu0 0
    %795 = vmatprep.subr.bf16.mxu0 0
    %796 = vmatpush1.bf16.msra.mxu0 0
    %797 = vmatprep.subr.bf16.mxu0 0
    %798 = vmatpush1.bf16.msra.mxu0 0
    %799 = vmatprep.subr.bf16.mxu0 0
    %800 = vmatpush1.bf16.msra.mxu0 0
    %801 = vmatprep.subr.bf16.mxu0 0
    %802 = vmatpush1.bf16.msra.mxu0 0
    %803 = vmatprep.subr.bf16.mxu0 0
    %804 = vmatpush1.bf16.msra.mxu0 0
    %805 = vmatprep.subr.bf16.mxu0 0
    %806 = vmatpush1.bf16.msra.mxu0 0
    %807 = vmatprep.subr.bf16.mxu0 0
    %808 = vmatpush1.bf16.msra.mxu0 0
    %809 = vmatprep.subr.bf16.mxu0 0
    %810 = vmatpush1.bf16.msra.mxu0 0
    %811 = vmatprep.subr.bf16.mxu0 0
    %812 = vmatpush1.bf16.msra.mxu0 0
    %813 = vmatprep.mubr.bf16.mxu0 0
    %814 = vmatmul.mubr.bf16.gmra.mrb[0].mxu0 %v779
    %v815 = vpop.f32.mrb[0].mxu0
    %v816 = vadd.f32 %v765, %v815
    %v817 = vpop.f32.mrb[0].mxu0
    %v818 = vpop.f32.mrb[0].mxu0
    %v819 = vadd.f32 %v765, %v818
    %v820 = vpop.f32.mrb[0].mxu0
    %821 = vdwg.mxu0
    %v822 = vpack.c.bf16 %v819, %v816
    %v823 = vmul.bf16 %v822, %v194
    %v824 = vmul.bf16 %v822, %v196
    %v825 = vmul.bf16 %v822, %v198
    %v826 = vmul.bf16 %v822, %v200
    %831 = vrot.lane.b32.xlu0 %v823, 96
    %v832 = vpop.permute.xlu0 %831
    %833 = vrot.lane.b32.xlu0 %v824, 96
    %v834 = vpop.permute.xlu0 %833
    %835 = vrot.lane.b32.xlu0 %v825, 96
    %v836 = vpop.permute.xlu0 %835
    %837 = vrot.lane.b32.xlu0 %v826, 96
    %v838 = vpop.permute.xlu0 %837
    %v840 = vsel %vm71, %v822, 0
    %v843 = vsel %vm71, %v832, 0
    %v846 = vsel %vm71, %v834, 0
    %v849 = vsel %vm71, %v836, 0
    %v852 = vsel %vm71, %v838, 0
    %854 = vmatprep.subr.bf16.mxu0 0
    %855 = vmatpush1.bf16.xpose.msra.mxu0 %v843
    %856 = vmatprep.subr.bf16.mxu0 0
    %857 = vmatpush1.bf16.xpose.msra.mxu0 %v846
    %858 = vmatprep.subr.bf16.mxu0 0
    %859 = vmatpush1.bf16.xpose.msra.mxu0 %v849
    %860 = vmatprep.subr.bf16.mxu0 0
    %861 = vmatpush1.bf16.xpose.msra.mxu0 %v852
    %862 = vmatprep.subr.bf16.mxu0 0
    %863 = vmatpush1.bf16.xpose.msra.mxu0 0
    %864 = vmatprep.subr.bf16.mxu0 0
    %865 = vmatpush1.bf16.xpose.msra.mxu0 0
    %866 = vmatprep.subr.bf16.mxu0 0
    %867 = vmatpush1.bf16.xpose.msra.mxu0 0
    %868 = vmatprep.subr.bf16.mxu0 0
    %869 = vmatpush1.bf16.xpose.msra.mxu0 0
    %870 = vmatprep.subr.bf16.mxu0 0
    %871 = vmatpush1.bf16.xpose.msra.mxu0 0
    %872 = vmatprep.subr.bf16.mxu0 0
    %873 = vmatpush1.bf16.xpose.msra.mxu0 0
    %874 = vmatprep.subr.bf16.mxu0 0
    %875 = vmatpush1.bf16.xpose.msra.mxu0 0
    %876 = vmatprep.subr.bf16.mxu0 0
    %877 = vmatpush1.bf16.xpose.msra.mxu0 0
    %878 = vmatprep.subr.bf16.mxu0 0
    %879 = vmatpush1.bf16.xpose.msra.mxu0 0
    %880 = vmatprep.subr.bf16.mxu0 0
    %881 = vmatpush1.bf16.xpose.msra.mxu0 0
    %882 = vmatprep.subr.bf16.mxu0 0
    %883 = vmatpush1.bf16.xpose.msra.mxu0 0
    %884 = vmatprep.subr.bf16.mxu0 0
    %885 = vmatpush1.bf16.xpose.msra.mxu0 0
    %886 = vmatprep.mubr.bf16.mxu0 0
    %887 = vmatmul.mubr.bf16.gmra.mrb[0].mxu0 %v840
    %v888 = vpop.f32.mrb[0].mxu0
    %v889 = vadd.f32 0.0, %v888
    %v890 = vpop.f32.mrb[0].mxu0
    %v891 = vpop.f32.mrb[0].mxu0
    %v892 = vadd.f32 0.0, %v891
    %v893 = vpop.f32.mrb[0].mxu0
    %894 = vdwg.mxu0
    %v895 = vsel %vm277, %v889, -inf
    %896 = vmax.xlane.f32.xlu0 %v895
    %v897 = vpop.xlane.xlu0 %896
    %v898 = vsel %vm277, %v892, -inf
    %899 = vmax.xlane.f32.xlu0 %v898
    %v900 = vpop.xlane.xlu0 %899
    %v901 = vsub.f32 %v889, %v897
    %v902 = vsub.f32 %v892, %v900
    %v903 = vmul.f32 %v901, 1.442695
    %v904 = vpow.pop %v903
    %v905 = vmul.f32 %v902, 1.442695
    %v906 = vpow.pop %v905
    %v907 = vmul.f32 %v904, %v48
    %v908 = vmul.f32 %v906, %v49
    %v909 = vpack.c.bf16 %v908, %v907
    %v911 = vsel %vm277, %v909, 0
    %913 = vmatprep.subr.bf16.mxu0 0
    %914 = vmatpush1.bf16.msra.mxu0 %v309
    %915 = vmatprep.subr.bf16.mxu0 0
    %916 = vmatpush1.bf16.msra.mxu0 %v310
    %917 = vmatprep.subr.bf16.mxu0 0
    %918 = vmatpush1.bf16.msra.mxu0 %v311
    %919 = vmatprep.subr.bf16.mxu0 0
    %920 = vmatpush1.bf16.msra.mxu0 %v312
    %921 = vmatprep.subr.bf16.mxu0 0
    %922 = vmatpush1.bf16.msra.mxu0 0
    %923 = vmatprep.subr.bf16.mxu0 0
    %924 = vmatpush1.bf16.msra.mxu0 0
    %925 = vmatprep.subr.bf16.mxu0 0
    %926 = vmatpush1.bf16.msra.mxu0 0
    %927 = vmatprep.subr.bf16.mxu0 0
    %928 = vmatpush1.bf16.msra.mxu0 0
    %929 = vmatprep.subr.bf16.mxu0 0
    %930 = vmatpush1.bf16.msra.mxu0 0
    %931 = vmatprep.subr.bf16.mxu0 0
    %932 = vmatpush1.bf16.msra.mxu0 0
    %933 = vmatprep.subr.bf16.mxu0 0
    %934 = vmatpush1.bf16.msra.mxu0 0
    %935 = vmatprep.subr.bf16.mxu0 0
    %936 = vmatpush1.bf16.msra.mxu0 0
    %937 = vmatprep.subr.bf16.mxu0 0
    %938 = vmatpush1.bf16.msra.mxu0 0
    %939 = vmatprep.subr.bf16.mxu0 0
    %940 = vmatpush1.bf16.msra.mxu0 0
    %941 = vmatprep.subr.bf16.mxu0 0
    %942 = vmatpush1.bf16.msra.mxu0 0
    %943 = vmatprep.subr.bf16.mxu0 0
    %944 = vmatpush1.bf16.msra.mxu0 0
    %945 = vmatprep.mubr.bf16.mxu0 0
    %946 = vmatmul.mubr.bf16.gmra.mrb[0].mxu0 %v911
    %v947 = vpop.f32.mrb[0].mxu0
    %v948 = vadd.f32 0.0, %v947
    %v949 = vpop.f32.mrb[0].mxu0
    %v950 = vpop.f32.mrb[0].mxu0
    %v951 = vadd.f32 0.0, %v950
    %v952 = vpop.f32.mrb[0].mxu0
    %953 = vdwg.mxu0
    %v954 = vrcp.pop %v948
    %v955 = vrcp.pop %v951
    %v956 = vmul.f32 %v907, %v954
    %v957 = vmul.f32 %v908, %v955
    %v958 = vpack.c.bf16 %v957, %v956
    %959 = vrot.lane.b32.xlu0 %v823, 64
    %v960 = vpop.permute.xlu0 %959
    %961 = vrot.lane.b32.xlu0 %v824, 64
    %v962 = vpop.permute.xlu0 %961
    %963 = vrot.lane.b32.xlu0 %v825, 64
    %v964 = vpop.permute.xlu0 %963
    %965 = vrot.lane.b32.xlu0 %v826, 64
    %v966 = vpop.permute.xlu0 %965
    %v972 = vsel %vm277, %v958, 0
    %974 = vmatprep.subr.bf16.mxu0 0
    %975 = vmatpush1.bf16.msra.mxu0 %v960
    %976 = vmatprep.subr.bf16.mxu0 0
    %977 = vmatpush1.bf16.msra.mxu0 %v962
    %978 = vmatprep.subr.bf16.mxu0 0
    %979 = vmatpush1.bf16.msra.mxu0 %v964
    %980 = vmatprep.subr.bf16.mxu0 0
    %981 = vmatpush1.bf16.msra.mxu0 %v966
    %982 = vmatprep.subr.bf16.mxu0 0
    %983 = vmatpush1.bf16.msra.mxu0 0
    %984 = vmatprep.subr.bf16.mxu0 0
    %985 = vmatpush1.bf16.msra.mxu0 0
    %986 = vmatprep.subr.bf16.mxu0 0
    %987 = vmatpush1.bf16.msra.mxu0 0
    %988 = vmatprep.subr.bf16.mxu0 0
    %989 = vmatpush1.bf16.msra.mxu0 0
    %990 = vmatprep.subr.bf16.mxu0 0
    %991 = vmatpush1.bf16.msra.mxu0 0
    %992 = vmatprep.subr.bf16.mxu0 0
    %993 = vmatpush1.bf16.msra.mxu0 0
    %994 = vmatprep.subr.bf16.mxu0 0
    %995 = vmatpush1.bf16.msra.mxu0 0
    %996 = vmatprep.subr.bf16.mxu0 0
    %997 = vmatpush1.bf16.msra.mxu0 0
    %998 = vmatprep.subr.bf16.mxu0 0
    %999 = vmatpush1.bf16.msra.mxu0 0
    %1000 = vmatprep.subr.bf16.mxu0 0
    %1001 = vmatpush1.bf16.msra.mxu0 0
    %1002 = vmatprep.subr.bf16.mxu0 0
    %1003 = vmatpush1.bf16.msra.mxu0 0
    %1004 = vmatprep.subr.bf16.mxu0 0
    %1005 = vmatpush1.bf16.msra.mxu0 0
    %1006 = vmatprep.mubr.bf16.mxu0 0
    %1007 = vmatmul.mubr.bf16.gmra.mrb[0].mxu0 %v972
    %v1008 = vpop.f32.mrb[0].mxu0
    %v1009 = vadd.f32 0.0, %v1008
    %v1010 = vpop.f32.mrb[0].mxu0
    %v1011 = vpop.f32.mrb[0].mxu0
    %v1012 = vadd.f32 0.0, %v1011
    %v1013 = vpop.f32.mrb[0].mxu0
    %1014 = vdwg.mxu0
    %v1015 = vpack.c.bf16 %v1012, %v1009
    %1016 = vrot.lane.b32.xlu0 %v774, 32
    %v1017 = vpop.permute.xlu0 %1016
    %1018 = vrot.lane.b32.xlu0 %v775, 32
    %v1019 = vpop.permute.xlu0 %1018
    %v1023 = vsel %vm71, %v1015, 0
    %1025 = vmatprep.subr.bf16.mxu0 0
    %1026 = vmatpush1.bf16.msra.mxu0 %v1017
    %1027 = vmatprep.subr.bf16.mxu0 0
    %1028 = vmatpush1.bf16.msra.mxu0 %v1019
    %1029 = vmatprep.subr.bf16.mxu0 0
    %1030 = vmatpush1.bf16.msra.mxu0 0
    %1031 = vmatprep.subr.bf16.mxu0 0
    %1032 = vmatpush1.bf16.msra.mxu0 0
    %1033 = vmatprep.subr.bf16.mxu0 0
    %1034 = vmatpush1.bf16.msra.mxu0 0
    %1035 = vmatprep.subr.bf16.mxu0 0
    %1036 = vmatpush1.bf16.msra.mxu0 0
    %1037 = vmatprep.subr.bf16.mxu0 0
    %1038 = vmatpush1.bf16.msra.mxu0 0
    %1039 = vmatprep.subr.bf16.mxu0 0
    %1040 = vmatpush1.bf16.msra.mxu0 0
    %1041 = vmatprep.subr.bf16.mxu0 0
    %1042 = vmatpush1.bf16.msra.mxu0 0
    %1043 = vmatprep.subr.bf16.mxu0 0
    %1044 = vmatpush1.bf16.msra.mxu0 0
    %1045 = vmatprep.subr.bf16.mxu0 0
    %1046 = vmatpush1.bf16.msra.mxu0 0
    %1047 = vmatprep.subr.bf16.mxu0 0
    %1048 = vmatpush1.bf16.msra.mxu0 0
    %1049 = vmatprep.subr.bf16.mxu0 0
    %1050 = vmatpush1.bf16.msra.mxu0 0
    %1051 = vmatprep.subr.bf16.mxu0 0
    %1052 = vmatpush1.bf16.msra.mxu0 0
    %1053 = vmatprep.subr.bf16.mxu0 0
    %1054 = vmatpush1.bf16.msra.mxu0 0
    %1055 = vmatprep.subr.bf16.mxu0 0
    %1056 = vmatpush1.bf16.msra.mxu0 0
    %1057 = vmatprep.mubr.bf16.mxu0 0
    %1058 = vmatmul.mubr.bf16.gmra.mrb[0].mxu0 %v1023
    %v1059 = vpop.f32.mrb[0].mxu0
    %v1060 = vadd.f32 0.0, %v1059
    %v1061 = vpop.f32.mrb[0].mxu0
    %v1062 = vpop.f32.mrb[0].mxu0
    %v1063 = vadd.f32 0.0, %v1062
    %v1064 = vpop.f32.mrb[0].mxu0
    %1065 = vdwg.mxu0
    %v1066 = vadd.f32 %v705, %v1060
    %v1067 = vadd.f32 %v706, %v1063
    %v1068 = vlaneseq
    %v1069 = vshrl.u32 %v1068, 7
    %v1070 = vsub.s32 2, %v1069
    %v1071 = vrot.slane %v708, %v1070
    %v1072 = vadd.f32 %v1066, %v1071
    %v1073 = vadd.f32 %v1067, %v1071
    %v1074 = vsel %vm71, %v1072, 0.0
    %1075 = vadd.xlane.f32.xlu0 %v1074
    %v1076 = vpop.xlane.xlu0 %1075
    %v1077 = vsel %vm71, %v1073, 0.0
    %1078 = vadd.xlane.f32.xlu0 %v1077
    %v1079 = vpop.xlane.xlu0 %1078
    %v1080 = vmul.f32 %v1076, %v78
    %v1081 = vmul.f32 %v1079, %v78
    %v1082 = vsub.f32 %v1072, %v1080
    %v1083 = vsub.f32 %v1073, %v1081
    %v1084 = vmul.f32 %v1082, %v1082
    %v1085 = vmul.f32 %v1083, %v1083
    %v1086 = vsel %vm71, %v1084, 0.0
    %1087 = vadd.xlane.f32.xlu0 %v1086
    %v1088 = vpop.xlane.xlu0 %1087
    %v1089 = vsel %vm71, %v1085, 0.0
    %1090 = vadd.xlane.f32.xlu0 %v1089
    %v1091 = vpop.xlane.xlu0 %1090
    %v1092 = vmul.f32 %v1088, %v78
    %v1093 = vmul.f32 %v1091, %v78
    %v1094 = vadd.f32 %v1092, 1e-05
    %v1095 = vadd.f32 %v1093, 1e-05
    %v1096 = vrsqrt.pop %v1094
    %v1097 = vrsqrt.pop %v1095
    %v1098 = vmul.f32 %v1082, %v1096
    %v1099 = vmul.f32 %v1083, %v1097
    %v1100 = vlaneseq
    %v1101 = vshrl.u32 %v1100, 7
    %v1102 = vsub.s32 3, %v1101
    %v1103 = vrot.slane %v708, %v1102
    %v1104 = vmul.f32 %v1098, %v1103
    %v1105 = vmul.f32 %v1099, %v1103
    %v1106 = vlaneseq
    %v1107 = vshrl.u32 %v1106, 7
    %v1108 = vsub.s32 4, %v1107
    %v1109 = vrot.slane %v708, %v1108
    %v1110 = vadd.f32 %v1104, %v1109
    %v1111 = vadd.f32 %v1105, %v1109
    %v1112 = vpack.c.bf16 %v1111, %v1110
    %v1113 = vlaneseq
    %v1114 = vshrl.u32 %v1113, 7
    %v1115 = vsub.s32 7, %v1114
    %v1116 = vrot.slane %v708, %v1115
    %v1117 = vunpack.c.h.b16 %v710
    %v1118 = vunpack.c.h.b16 %v711
    %v1119 = vunpack.c.h.b16 %v712
    %v1120 = vunpack.c.h.b16 %v713
    %v1121 = vpack.c.b16 %v1118, %v1117
    %v1122 = vpack.c.b16 %v1120, %v1119
    %v1126 = vsel %vm71, %v1112, 0
    %1128 = vmatprep.subr.bf16.mxu0 0
    %1129 = vmatpush1.bf16.msra.mxu0 %v1121
    %1130 = vmatprep.subr.bf16.mxu0 0
    %1131 = vmatpush1.bf16.msra.mxu0 %v1122
    %1132 = vmatprep.subr.bf16.mxu0 0
    %1133 = vmatpush1.bf16.msra.mxu0 0
    %1134 = vmatprep.subr.bf16.mxu0 0
    %1135 = vmatpush1.bf16.msra.mxu0 0
    %1136 = vmatprep.subr.bf16.mxu0 0
    %1137 = vmatpush1.bf16.msra.mxu0 0
    %1138 = vmatprep.subr.bf16.mxu0 0
    %1139 = vmatpush1.bf16.msra.mxu0 0
    %1140 = vmatprep.subr.bf16.mxu0 0
    %1141 = vmatpush1.bf16.msra.mxu0 0
    %1142 = vmatprep.subr.bf16.mxu0 0
    %1143 = vmatpush1.bf16.msra.mxu0 0
    %1144 = vmatprep.subr.bf16.mxu0 0
    %1145 = vmatpush1.bf16.msra.mxu0 0
    %1146 = vmatprep.subr.bf16.mxu0 0
    %1147 = vmatpush1.bf16.msra.mxu0 0
    %1148 = vmatprep.subr.bf16.mxu0 0
    %1149 = vmatpush1.bf16.msra.mxu0 0
    %1150 = vmatprep.subr.bf16.mxu0 0
    %1151 = vmatpush1.bf16.msra.mxu0 0
    %1152 = vmatprep.subr.bf16.mxu0 0
    %1153 = vmatpush1.bf16.msra.mxu0 0
    %1154 = vmatprep.subr.bf16.mxu0 0
    %1155 = vmatpush1.bf16.msra.mxu0 0
    %1156 = vmatprep.subr.bf16.mxu0 0
    %1157 = vmatpush1.bf16.msra.mxu0 0
    %1158 = vmatprep.subr.bf16.mxu0 0
    %1159 = vmatpush1.bf16.msra.mxu0 0
    %1160 = vmatprep.mubr.bf16.mxu0 0
    %1161 = vmatmul.mubr.bf16.gmra.mrb[0].mxu0 %v1126
    %v1162 = vpop.f32.mrb[0].mxu0
    %v1163 = vadd.f32 %v1116, %v1162
    %v1164 = vpop.f32.mrb[0].mxu0
    %v1165 = vpop.f32.mrb[0].mxu0
    %v1166 = vadd.f32 %v1116, %v1165
    %v1167 = vpop.f32.mrb[0].mxu0
    %1168 = vdwg.mxu0
    %v1169 = vmul.f32 %v1163, 0.5
    %v1170 = vmul.f32 %v1166, 0.5
    %v1171 = vmul.f32 %v1163, 0.70710677
    %v1172 = vmul.f32 %v1166, 0.70710677
    %vm1173 = vcmp.lt.f32.partialorder %v1171, 0.0
    %vm1174 = vcmp.lt.f32.partialorder %v1172, 0.0
    %v1175 = vsel %vm1173, -1.0, 1.0
    %v1176 = vsel %vm1174, -1.0, 1.0
    %v1177 = vand.u32 2147483647, %v1171
    %v1178 = vand.u32 2147483647, %v1172
    %v1179 = vmul.f32 %v1177, 0.3275911
    %v1180 = vmul.f32 %v1178, 0.3275911
    %v1181 = vadd.f32 %v1179, 1.0
    %v1182 = vadd.f32 %v1180, 1.0
    %v1183 = vrcp.pop %v1181
    %v1184 = vmul.f32 1.0, %v1183
    %v1185 = vrcp.pop %v1182
    %v1186 = vmul.f32 1.0, %v1185
    %v1187 = vmul.f32 %v1184, 1.0614054
    %v1188 = vmul.f32 %v1186, 1.0614054
    %v1189 = vadd.f32 %v1187, -1.4531521
    %v1190 = vadd.f32 %v1188, -1.4531521
    %v1191 = vmul.f32 %v1189, %v1184
    %v1192 = vmul.f32 %v1190, %v1186
    %v1193 = vadd.f32 %v1191, 1.4214138
    %v1194 = vadd.f32 %v1192, 1.4214138
    %v1195 = vmul.f32 %v1193, %v1184
    %v1196 = vmul.f32 %v1194, %v1186
    %v1197 = vadd.f32 %v1195, -0.28449672
    %v1198 = vadd.f32 %v1196, -0.28449672
    %v1199 = vmul.f32 %v1197, %v1184
    %v1200 = vmul.f32 %v1198, %v1186
    %v1201 = vadd.f32 %v1199, 0.2548296
    %v1202 = vadd.f32 %v1200, 0.2548296
    %v1203 = vmul.f32 %v1201, %v1184
    %v1204 = vmul.f32 %v1202, %v1186
    %v1205 = vsub.f32 0.0, %v1177
    %v1206 = vsub.f32 0.0, %v1178
    %v1207 = vmul.f32 %v1205, %v1177
    %v1208 = vmul.f32 %v1206, %v1178
    %v1209 = vmul.f32 %v1207, 1.442695
    %v1210 = vpow.pop %v1209
    %v1211 = vmul.f32 %v1208, 1.442695
    %v1212 = vpow.pop %v1211
    %v1213 = vmul.f32 %v1203, %v1210
    %v1214 = vmul.f32 %v1204, %v1212
    %v1215 = vsub.f32 1.0, %v1213
    %v1216 = vsub.f32 1.0, %v1214
    %v1217 = vmul.f32 %v1175, %v1215
    %v1218 = vmul.f32 %v1176, %v1216
    %v1219 = vadd.f32 %v1217, 1.0
    %v1220 = vadd.f32 %v1218, 1.0
    %v1221 = vmul.f32 %v1169, %v1219
    %v1222 = vmul.f32 %v1170, %v1220
    %v1223 = vpack.c.bf16 %v1222, %v1221
    %v1232 = vunpack.c.l.b16 %v715
    %v1233 = vunpack.c.l.b16 %v716
    %v1234 = vunpack.c.l.b16 %v717
    %v1235 = vunpack.c.l.b16 %v718
    %v1236 = vunpack.c.l.b16 %v719
    %v1237 = vunpack.c.l.b16 %v720
    %v1238 = vunpack.c.l.b16 %v721
    %v1239 = vunpack.c.l.b16 %v722
    %v1240 = vpack.c.b16 %v1233, %v1232
    %v1241 = vpack.c.b16 %v1235, %v1234
    %v1242 = vpack.c.b16 %v1237, %v1236
    %v1243 = vpack.c.b16 %v1239, %v1238
    %v1249 = vsel %vm277, %v1223, 0
    %1251 = vmatprep.subr.bf16.mxu0 0
    %1252 = vmatpush1.bf16.msra.mxu0 %v1240
    %1253 = vmatprep.subr.bf16.mxu0 0
    %1254 = vmatpush1.bf16.msra.mxu0 %v1241
    %1255 = vmatprep.subr.bf16.mxu0 0
    %1256 = vmatpush1.bf16.msra.mxu0 %v1242
    %1257 = vmatprep.subr.bf16.mxu0 0
    %1258 = vmatpush1.bf16.msra.mxu0 %v1243
    %1259 = vmatprep.subr.bf16.mxu0 0
    %1260 = vmatpush1.bf16.msra.mxu0 0
    %1261 = vmatprep.subr.bf16.mxu0 0
    %1262 = vmatpush1.bf16.msra.mxu0 0
    %1263 = vmatprep.subr.bf16.mxu0 0
    %1264 = vmatpush1.bf16.msra.mxu0 0
    %1265 = vmatprep.subr.bf16.mxu0 0
    %1266 = vmatpush1.bf16.msra.mxu0 0
    %1267 = vmatprep.subr.bf16.mxu0 0
    %1268 = vmatpush1.bf16.msra.mxu0 0
    %1269 = vmatprep.subr.bf16.mxu0 0
    %1270 = vmatpush1.bf16.msra.mxu0 0
    %1271 = vmatprep.subr.bf16.mxu0 0
    %1272 = vmatpush1.bf16.msra.mxu0 0
    %1273 = vmatprep.subr.bf16.mxu0 0
    %1274 = vmatpush1.bf16.msra.mxu0 0
    %1275 = vmatprep.subr.bf16.mxu0 0
    %1276 = vmatpush1.bf16.msra.mxu0 0
    %1277 = vmatprep.subr.bf16.mxu0 0
    %1278 = vmatpush1.bf16.msra.mxu0 0
    %1279 = vmatprep.subr.bf16.mxu0 0
    %1280 = vmatpush1.bf16.msra.mxu0 0
    %1281 = vmatprep.subr.bf16.mxu0 0
    %1282 = vmatpush1.bf16.msra.mxu0 0
    %1283 = vmatprep.mubr.bf16.mxu0 0
    %1284 = vmatmul.mubr.bf16.gmra.mrb[0].mxu0 %v1249
    %v1285 = vpop.f32.mrb[0].mxu0
    %v1286 = vadd.f32 0.0, %v1285
    %v1287 = vpop.f32.mrb[0].mxu0
    %v1288 = vpop.f32.mrb[0].mxu0
    %v1289 = vadd.f32 0.0, %v1288
    %v1290 = vpop.f32.mrb[0].mxu0
    %1291 = vdwg.mxu0
    %v1292 = vadd.f32 %v1072, %v1286
    %v1293 = vadd.f32 %v1073, %v1289
    %v1294 = vlaneseq
    %v1295 = vshrl.u32 %v1294, 7
    %v1296 = vsub.s32 5, %v1295
    %v1297 = vrot.slane %v708, %v1296
    %v1298 = vadd.f32 %v1292, %v1297
    %v1299 = vadd.f32 %v1293, %v1297
    %1300 = vst.msk [vmem:[#allocation5] sm:$0xff] %vm71, %v1298
    %1301 = vst.msk [vmem:[#allocation5 + $0x8] sm:$0xff] %vm71, %v1299
    // Predicated region
    $region26: #{tower_vit_forward.1} parent=1 // pred_check
      _
    $region27: #{tower_vit_forward.1} parent=1 // pred_check_branch
      %1303 = sbr.rel (0) target = $region29
    $region28: #{tower_vit_forward.1} parent=1 // pred_region
      %s1305 = ssub.s32 256, 256
      %1306 = vsyncadd [#allocation4], %s1305
      %s1307 = sshll.u32 [#allocation5], 4
      %s1308 = int_to_ptr.vmem [resolvable:$true] %s1307
      %1313 = dma.vmem_to_hbm [thread:$0]  %s1308, 256, %s5, [#allocation4], 128, 128, 8
    $region29: #{tower_vit_forward.1} parent=1 // pred_fallthru
      _
    // Predicated region
    $region30: #{tower_vit_forward.1} parent=1 // pred_check
      _
    $region31: #{tower_vit_forward.1} parent=1 // pred_check_branch
      %1315 = sbr.rel (0) target = $region33
    $region32: #{tower_vit_forward.1} parent=1 // pred_region
      %1316 = dma.done [#allocation4], 256
    $region33: #{tower_vit_forward.1} parent=1 // pred_fallthru
      _
    %1317 = vsyncpa [#allocation3], 1
    %1318 = vsyncpa [#allocation4], 1

</llo_original>
